<compile_context>
chip_gen: v6e
topology: v6e:2x2x1
jax: 0.10.0
libtpu: 0.0.40
codegen_flags: <defaults>
</compile_context>

<pallas_src>
import jax
import jax.numpy as jnp
from jax.experimental import pallas as pl
from jax.experimental.pallas import tpu as pltpu


def _round_up(x, m):
    return ((x + m - 1) // m) * m


def _vmem_capacity_bytes():
    # Generation-aware VMEM size (v5e/v6e: 128 MiB; v7x: 64 MiB per core).
    # Conservative fallback if the query API is unavailable.
    try:
        return int(pltpu.get_tpu_info().vmem_capacity_bytes)
    except Exception:
        return 64 * 1024 * 1024


def _detection_kernel(x_ref, w1_ref, b1_ref, w2_ref, b2_ref, w3_ref, b3_ref,
                      cooc_ref, o_ref):
    # Layer 1: Linear + ReLU   (F -> F//2).  bf16 operands, f32 accumulate.
    h = jnp.dot(x_ref[...], w1_ref[...],
                preferred_element_type=jnp.float32) + b1_ref[...]
    h = jnp.maximum(h, 0.0)

    # Layer 2: Linear + ReLU   (F//2 -> F//4)
    h = jnp.dot(h.astype(w2_ref.dtype), w2_ref[...],
                preferred_element_type=jnp.float32) + b2_ref[...]
    h = jnp.maximum(h, 0.0)

    # Output layer: Linear + Sigmoid   (F//4 -> 320, lane-padded to 384)
    logits = jnp.dot(h.astype(w3_ref.dtype), w3_ref[...],
                     preferred_element_type=jnp.float32) + b3_ref[...]
    occ = jax.nn.sigmoid(logits)          # f32 sigmoid: safe on all generations

    # objects_nearby = objects_occurrence @ cooccurrence_matrix
    # Padded cooc rows are zero, so occ's sigmoid(0)=0.5 pad columns are inert.
    o_ref[...] = jnp.dot(occ.astype(cooc_ref.dtype), cooc_ref[...],
                         preferred_element_type=jnp.float32).astype(o_ref.dtype)


def object_detection_forward(image_feature, params, *, use_bf16=True,
                             batch_tile=None):
    """image_feature: (B, F) float32.  params: dict of weights (pre-transposed)."""
    B, F = image_feature.shape
    w1, b1 = params["w1"], params["b1"]
    w2, b2 = params["w2"], params["b2"]
    w3, b3 = params["w3"], params["b3"]
    cooc = params["cooc"]
    F2, F4 = w1.shape[1], w2.shape[1]
    out_dim = cooc.shape[1]

    # ---- Lane-dense padding: every matmul dim to a multiple of 128 ---------
    F_p, F2_p, F4_p = _round_up(F, 128), _round_up(F2, 128), _round_up(F4, 128)
    out_p = _round_up(out_dim, 128)                      # 320 -> 384

    w1 = jnp.pad(w1, ((0, F_p - F), (0, F2_p - F2)))
    w2 = jnp.pad(w2, ((0, F2_p - F2), (0, F4_p - F4)))
    w3 = jnp.pad(w3, ((0, F4_p - F4), (0, out_p - out_dim)))
    b1 = jnp.pad(b1, ((0, 0), (0, F2_p - F2)))
    b2 = jnp.pad(b2, ((0, 0), (0, F4_p - F4)))
    b3 = jnp.pad(b3, ((0, 0), (0, out_p - out_dim)))
    cooc = jnp.pad(cooc, ((0, out_p - out_dim), (0, out_p - out_dim)))

    # ---- Matmul-operand dtype: bf16 is MXU-native on v5e/v6e/v7x -----------
    mm_dtype = jnp.bfloat16 if use_bf16 else jnp.float32
    w1, w2, w3, cooc = (a.astype(mm_dtype) for a in (w1, w2, w3, cooc))
    opnd_bytes = jnp.dtype(mm_dtype).itemsize

    # ---- Residency-aware VMEM budget + batch tiling -------------------------
    sub = 16 if mm_dtype == jnp.bfloat16 else 8           # sublane packing
    b_pad = _round_up(B, sub)

    vmem_cap = _vmem_capacity_bytes()
    budget = int(vmem_cap * 0.75)                         # headroom for compiler
    # Resident (single-buffered) operands: weights + cooc (mm dtype), biases f32.
    resident_bytes = ((F_p * F2_p + F2_p * F4_p + F4_p * out_p
                       + out_p * out_p) * opnd_bytes
                      + (F2_p + F4_p + out_p) * 4)
    # Per batch-row bytes: double-buffered x & out streams + f32 intermediates
    # (h1, h2, logits/occ).
    per_row = (2 * (F_p * opnd_bytes + out_p * 4)
               + (F2_p + F4_p + 2 * out_p) * 4)

    if batch_tile is None:
        avail = max(budget - resident_bytes, per_row * sub)
        batch_tile = min(avail // per_row, 4096)
    batch_tile = max(sub, (int(batch_tile) // sub) * sub)
    # Megacore (v7x): guarantee >= 2 grid steps whenever the batch can split.
    if b_pad >= 2 * sub:
        batch_tile = min(batch_tile, max(sub, ((b_pad // 2) // sub) * sub))
    batch_tile = min(batch_tile, b_pad)
    b_pad = _round_up(b_pad, batch_tile)
    grid = (b_pad // batch_tile,)

    x = image_feature.astype(mm_dtype)
    if (b_pad, F_p) != (B, F):
        x = jnp.pad(x, ((0, b_pad - B), (0, F_p - F)))

    # Explicit scoped-VMEM limit: estimated usage + ~30% headroom, clamped to HW.
    est = resident_bytes + batch_tile * per_row
    vmem_limit = int(min(vmem_cap, max(est * 1.3, 32 * 1024 * 1024)))

    def run(single_buffer_residents):
        if single_buffer_residents:
            resident = lambda a: pl.BlockSpec(a.shape, lambda i: (0, 0),
                                              pipeline_mode=pl.Buffered(1))
        else:
            resident = lambda a: pl.BlockSpec(a.shape, lambda i: (0, 0))
        return pl.pallas_call(
            _detection_kernel,
            out_shape=jax.ShapeDtypeStruct((b_pad, out_p), jnp.float32),
            grid=grid,
            in_specs=[pl.BlockSpec((batch_tile, F_p), lambda i: (i, 0)),
                      resident(w1), resident(b1), resident(w2), resident(b2),
                      resident(w3), resident(b3), resident(cooc)],
            out_specs=pl.BlockSpec((batch_tile, out_p), lambda i: (i, 0)),
            compiler_params=pltpu.CompilerParams(
                dimension_semantics=("parallel",),   # megacore-shard the batch
                vmem_limit_bytes=vmem_limit),
        )(x, w1, b1, w2, b2, w3, b3, cooc)

    try:
        out = run(True)      # single-buffer the grid-invariant operands
    except Exception:
        out = run(False)     # fall back to default double-buffering

    return out[:B, :out_dim]


def init_params(key, img_feature_size, output_size=320):
    """Deterministic synthetic parameters (shapes follow the nn.Module __init__)."""
    sizes = []
    cur, nxt = img_feature_size, img_feature_size // 2
    for _ in range(2):  # num_detection_layers = 2 (module default)
        sizes.append((cur, nxt))
        cur, nxt = nxt, nxt // 2
    sizes.append((cur, output_size))

    keys = jax.random.split(key, 2 * len(sizes) + 1)
    params = {}
    for i, (fin, fout) in enumerate(sizes):
        bound = 1.0 / jnp.sqrt(fin)
        # stored as (in, out): equivalent to PyTorch weight.T
        params[f"w{i+1}"] = jax.random.uniform(
            keys[2 * i], (fin, fout), jnp.float32, -bound, bound)
        params[f"b{i+1}"] = jax.random.uniform(
            keys[2 * i + 1], (1, fout), jnp.float32, -bound, bound)
    # synthetic cooccurrence matrix (stand-in for torch.load('matrix.pt'))
    params["cooc"] = jax.random.uniform(
        keys[-1], (output_size, output_size), jnp.float32, 0.0, 1.0)
    return params


def _reference(x, p):
    h = jnp.maximum(x @ p["w1"] + p["b1"], 0.0)
    h = jnp.maximum(h @ p["w2"] + p["b2"], 0.0)
    occ = jax.nn.sigmoid(h @ p["w3"] + p["b3"])
    return occ @ p["cooc"]


if __name__ == "__main__":
    key = jax.random.PRNGKey(0)
    k_x, k_p = jax.random.split(key)

    B = 8
    img_feature_size = 64  # small stand-in for hparams.img_feature_size

    params = init_params(k_p, img_feature_size)
    x = jax.random.normal(k_x, (B, img_feature_size), jnp.float32)

    ref = _reference(x, params)

    # f32 path: verifies the padding / tiling logic against the reference.
    out_f32 = jax.block_until_ready(
        object_detection_forward(x, params, use_bf16=False))
    assert out_f32.shape == (B, 320), out_f32.shape
    assert jnp.allclose(out_f32, ref, atol=1e-4, rtol=1e-4), "f32 mismatch vs reference"

    # bf16-operand path (default, perf): relaxed tolerance for bf16 rounding.
    out_bf16 = jax.block_until_ready(object_detection_forward(x, params))
    assert out_bf16.shape == (B, 320), out_bf16.shape
    assert jnp.allclose(out_bf16, ref, atol=2e-2, rtol=2e-2), "bf16 mismatch vs reference"

    print("KERNEL_OK")
</pallas_src>

<mosaic_0001>
module attributes {stable_mosaic.version = 11 : i64} {
  func.func @_detection_kernel(%arg0: i32, %arg1: memref<8x128xf32, #tpu.memory_space<vmem>>, %arg2: memref<128x128xf32, #tpu.memory_space<vmem>>, %arg3: memref<1x128xf32, #tpu.memory_space<vmem>>, %arg4: memref<128x128xf32, #tpu.memory_space<vmem>>, %arg5: memref<1x128xf32, #tpu.memory_space<vmem>>, %arg6: memref<128x384xf32, #tpu.memory_space<vmem>>, %arg7: memref<1x384xf32, #tpu.memory_space<vmem>>, %arg8: memref<384x384xf32, #tpu.memory_space<vmem>>, %arg9: memref<8x384xf32, #tpu.memory_space<vmem>>) attributes {dimension_semantics = [#tpu.dimension_semantics<parallel>], iteration_bounds = array<i64: 1>, scalar_prefetch = 0 : i64, scratch_operands = 0 : i64, tpu.core_type = #tpu.core_type<tc>, window_params = [{transform_indices = @transform_0, window_bounds = array<i64: 8, 128>}, {pipeline_mode = #tpu.pipeline_mode<synchronous>, transform_indices = @transform_1, window_bounds = array<i64: 128, 128>}, {pipeline_mode = #tpu.pipeline_mode<synchronous>, transform_indices = @transform_2, window_bounds = array<i64: 1, 128>}, {pipeline_mode = #tpu.pipeline_mode<synchronous>, transform_indices = @transform_3, window_bounds = array<i64: 128, 128>}, {pipeline_mode = #tpu.pipeline_mode<synchronous>, transform_indices = @transform_4, window_bounds = array<i64: 1, 128>}, {pipeline_mode = #tpu.pipeline_mode<synchronous>, transform_indices = @transform_5, window_bounds = array<i64: 128, 384>}, {pipeline_mode = #tpu.pipeline_mode<synchronous>, transform_indices = @transform_6, window_bounds = array<i64: 1, 384>}, {pipeline_mode = #tpu.pipeline_mode<synchronous>, transform_indices = @transform_7, window_bounds = array<i64: 384, 384>}, {transform_indices = @transform_8, window_bounds = array<i64: 8, 384>}]} {
    %c0 = arith.constant 0 : index
    %c0_0 = arith.constant 0 : index
    %0 = vector.load %arg1[%c0, %c0_0] : memref<8x128xf32, #tpu.memory_space<vmem>>, vector<8x128xf32>
    %c0_1 = arith.constant 0 : index
    %c0_2 = arith.constant 0 : index
    %1 = vector.load %arg2[%c0_1, %c0_2] : memref<128x128xf32, #tpu.memory_space<vmem>>, vector<128x128xf32>
    %cst = arith.constant dense<0.000000e+00> : vector<8x128xf32>
    %2 = tpu.matmul %0, %1, %cst {dimension_numbers = #tpu.dot_dimension_numbers<[1], [0], [0], [1], [0, 0, 1, 1], [], []>} : vector<8x128xf32>, vector<128x128xf32>, vector<8x128xf32> -> vector<8x128xf32>
    %c0_3 = arith.constant 0 : index
    %c0_4 = arith.constant 0 : index
    %3 = vector.load %arg3[%c0_3, %c0_4] : memref<1x128xf32, #tpu.memory_space<vmem>>, vector<1x128xf32>
    %4 = vector.broadcast %3 : vector<1x128xf32> to vector<8x128xf32>
    %5 = arith.addf %2, %4 : vector<8x128xf32>
    %cst_5 = arith.constant 0.000000e+00 : f32
    %6 = vector.broadcast %cst_5 : f32 to vector<8x128xf32>
    %7 = arith.maximumf %5, %6 : vector<8x128xf32>
    %c0_6 = arith.constant 0 : index
    %c0_7 = arith.constant 0 : index
    %8 = vector.load %arg4[%c0_6, %c0_7] : memref<128x128xf32, #tpu.memory_space<vmem>>, vector<128x128xf32>
    %cst_8 = arith.constant dense<0.000000e+00> : vector<8x128xf32>
    %9 = tpu.matmul %7, %8, %cst_8 {dimension_numbers = #tpu.dot_dimension_numbers<[1], [0], [0], [1], [0, 0, 1, 1], [], []>} : vector<8x128xf32>, vector<128x128xf32>, vector<8x128xf32> -> vector<8x128xf32>
    %c0_9 = arith.constant 0 : index
    %c0_10 = arith.constant 0 : index
    %10 = vector.load %arg5[%c0_9, %c0_10] : memref<1x128xf32, #tpu.memory_space<vmem>>, vector<1x128xf32>
    %11 = vector.broadcast %10 : vector<1x128xf32> to vector<8x128xf32>
    %12 = arith.addf %9, %11 : vector<8x128xf32>
    %cst_11 = arith.constant 0.000000e+00 : f32
    %13 = vector.broadcast %cst_11 : f32 to vector<8x128xf32>
    %14 = arith.maximumf %12, %13 : vector<8x128xf32>
    %c0_12 = arith.constant 0 : index
    %c0_13 = arith.constant 0 : index
    %15 = vector.load %arg6[%c0_12, %c0_13] : memref<128x384xf32, #tpu.memory_space<vmem>>, vector<128x384xf32>
    %cst_14 = arith.constant dense<0.000000e+00> : vector<8x384xf32>
    %16 = tpu.matmul %14, %15, %cst_14 {dimension_numbers = #tpu.dot_dimension_numbers<[1], [0], [0], [1], [0, 0, 1, 1], [], []>} : vector<8x128xf32>, vector<128x384xf32>, vector<8x384xf32> -> vector<8x384xf32>
    %c0_15 = arith.constant 0 : index
    %c0_16 = arith.constant 0 : index
    %17 = vector.load %arg7[%c0_15, %c0_16] : memref<1x384xf32, #tpu.memory_space<vmem>>, vector<1x384xf32>
    %18 = vector.broadcast %17 : vector<1x384xf32> to vector<8x384xf32>
    %19 = arith.addf %16, %18 : vector<8x384xf32>
    %20 = arith.negf %19 : vector<8x384xf32>
    %21 = math.exp %20 : vector<8x384xf32>
    %cst_17 = arith.constant 1.000000e+00 : f32
    %22 = vector.broadcast %cst_17 : f32 to vector<8x384xf32>
    %23 = arith.addf %22, %21 : vector<8x384xf32>
    %24 = arith.divf %22, %23 : vector<8x384xf32>
    %c0_18 = arith.constant 0 : index
    %c0_19 = arith.constant 0 : index
    %25 = vector.load %arg8[%c0_18, %c0_19] : memref<384x384xf32, #tpu.memory_space<vmem>>, vector<384x384xf32>
    %cst_20 = arith.constant dense<0.000000e+00> : vector<8x384xf32>
    %26 = tpu.matmul %24, %25, %cst_20 {dimension_numbers = #tpu.dot_dimension_numbers<[1], [0], [0], [1], [0, 0, 1, 1], [], []>} : vector<8x384xf32>, vector<384x384xf32>, vector<8x384xf32> -> vector<8x384xf32>
    %c0_21 = arith.constant 0 : index
    %c0_22 = arith.constant 0 : index
    %27 = vector.load %arg9[%c0_21, %c0_22] : memref<8x384xf32, #tpu.memory_space<vmem>>, vector<8x384xf32>
    tpu.vector_store %arg9[%c0_21, %c0_22], %26 {strides = array<i32>} : memref<8x384xf32, #tpu.memory_space<vmem>>, vector<8x384xf32>,
    return
  }
  func.func @transform_0(%arg0: i32) -> (i32, i32) {
    %c0_i32 = arith.constant 0 : i32
    %c0_i32_0 = arith.constant 0 : i32
    return %arg0, %c0_i32 : i32, i32
  }
  func.func @transform_1(%arg0: i32) -> (i32, i32) {
    %c0_i32 = arith.constant 0 : i32
    %c0_i32_0 = arith.constant 0 : i32
    %c0_i32_1 = arith.constant 0 : i32
    return %c0_i32, %c0_i32_0 : i32, i32
  }
  func.func @transform_2(%arg0: i32) -> (i32, i32) {
    %c0_i32 = arith.constant 0 : i32
    %c0_i32_0 = arith.constant 0 : i32
    %c0_i32_1 = arith.constant 0 : i32
    return %c0_i32, %c0_i32_0 : i32, i32
  }
  func.func @transform_3(%arg0: i32) -> (i32, i32) {
    %c0_i32 = arith.constant 0 : i32
    %c0_i32_0 = arith.constant 0 : i32
    %c0_i32_1 = arith.constant 0 : i32
    return %c0_i32, %c0_i32_0 : i32, i32
  }
  func.func @transform_4(%arg0: i32) -> (i32, i32) {
    %c0_i32 = arith.constant 0 : i32
    %c0_i32_0 = arith.constant 0 : i32
    %c0_i32_1 = arith.constant 0 : i32
    return %c0_i32, %c0_i32_0 : i32, i32
  }
  func.func @transform_5(%arg0: i32) -> (i32, i32) {
    %c0_i32 = arith.constant 0 : i32
    %c0_i32_0 = arith.constant 0 : i32
    %c0_i32_1 = arith.constant 0 : i32
    return %c0_i32, %c0_i32_0 : i32, i32
  }
  func.func @transform_6(%arg0: i32) -> (i32, i32) {
    %c0_i32 = arith.constant 0 : i32
    %c0_i32_0 = arith.constant 0 : i32
    %c0_i32_1 = arith.constant 0 : i32
    return %c0_i32, %c0_i32_0 : i32, i32
  }
  func.func @transform_7(%arg0: i32) -> (i32, i32) {
    %c0_i32 = arith.constant 0 : i32
    %c0_i32_0 = arith.constant 0 : i32
    %c0_i32_1 = arith.constant 0 : i32
    return %c0_i32, %c0_i32_0 : i32, i32
  }
  func.func @transform_8(%arg0: i32) -> (i32, i32) {
    %c0_i32 = arith.constant 0 : i32
    %c0_i32_0 = arith.constant 0 : i32
    return %arg0, %c0_i32 : i32, i32
  }
}

module attributes {stable_mosaic.version = 11 : i64} {
  func.func @_detection_kernel(%arg0: i32, %arg1: memref<8x128xf32, #tpu.memory_space<vmem>>, %arg2: memref<128x128xf32, #tpu.memory_space<vmem>>, %arg3: memref<1x128xf32, #tpu.memory_space<vmem>>, %arg4: memref<128x128xf32, #tpu.memory_space<vmem>>, %arg5: memref<1x128xf32, #tpu.memory_space<vmem>>, %arg6: memref<128x384xf32, #tpu.memory_space<vmem>>, %arg7: memref<1x384xf32, #tpu.memory_space<vmem>>, %arg8: memref<384x384xf32, #tpu.memory_space<vmem>>, %arg9: memref<8x384xf32, #tpu.memory_space<vmem>>) attributes {dimension_semantics = [#tpu.dimension_semantics<parallel>], iteration_bounds = array<i64: 1>, scalar_prefetch = 0 : i64, scratch_operands = 0 : i64, tpu.core_type = #tpu.core_type<tc>, window_params = [{transform_indices = @transform_0, window_bounds = array<i64: 8, 128>}, {pipeline_mode = #tpu.pipeline_mode<synchronous>, transform_indices = @transform_1, window_bounds = array<i64: 128, 128>}, {pipeline_mode = #tpu.pipeline_mode<synchronous>, transform_indices = @transform_2, window_bounds = array<i64: 1, 128>}, {pipeline_mode = #tpu.pipeline_mode<synchronous>, transform_indices = @transform_3, window_bounds = array<i64: 128, 128>}, {pipeline_mode = #tpu.pipeline_mode<synchronous>, transform_indices = @transform_4, window_bounds = array<i64: 1, 128>}, {pipeline_mode = #tpu.pipeline_mode<synchronous>, transform_indices = @transform_5, window_bounds = array<i64: 128, 384>}, {pipeline_mode = #tpu.pipeline_mode<synchronous>, transform_indices = @transform_6, window_bounds = array<i64: 1, 384>}, {pipeline_mode = #tpu.pipeline_mode<synchronous>, transform_indices = @transform_7, window_bounds = array<i64: 384, 384>}, {transform_indices = @transform_8, window_bounds = array<i64: 8, 384>}]} {
    %c0 = arith.constant 0 : index
    %c0_0 = arith.constant 0 : index
    %0 = vector.load %arg1[%c0, %c0_0] : memref<8x128xf32, #tpu.memory_space<vmem>>, vector<8x128xf32>
    %c0_1 = arith.constant 0 : index
    %c0_2 = arith.constant 0 : index
    %1 = vector.load %arg2[%c0_1, %c0_2] : memref<128x128xf32, #tpu.memory_space<vmem>>, vector<128x128xf32>
    %cst = arith.constant dense<0.000000e+00> : vector<8x128xf32>
    %2 = tpu.matmul %0, %1, %cst {dimension_numbers = #tpu.dot_dimension_numbers<[1], [0], [0], [1], [0, 0, 1, 1], [], []>} : vector<8x128xf32>, vector<128x128xf32>, vector<8x128xf32> -> vector<8x128xf32>
    %c0_3 = arith.constant 0 : index
    %c0_4 = arith.constant 0 : index
    %3 = vector.load %arg3[%c0_3, %c0_4] : memref<1x128xf32, #tpu.memory_space<vmem>>, vector<1x128xf32>
    %4 = vector.broadcast %3 : vector<1x128xf32> to vector<8x128xf32>
    %5 = arith.addf %2, %4 : vector<8x128xf32>
    %cst_5 = arith.constant 0.000000e+00 : f32
    %6 = vector.broadcast %cst_5 : f32 to vector<8x128xf32>
    %7 = arith.maximumf %5, %6 : vector<8x128xf32>
    %c0_6 = arith.constant 0 : index
    %c0_7 = arith.constant 0 : index
    %8 = vector.load %arg4[%c0_6, %c0_7] : memref<128x128xf32, #tpu.memory_space<vmem>>, vector<128x128xf32>
    %cst_8 = arith.constant dense<0.000000e+00> : vector<8x128xf32>
    %9 = tpu.matmul %7, %8, %cst_8 {dimension_numbers = #tpu.dot_dimension_numbers<[1], [0], [0], [1], [0, 0, 1, 1], [], []>} : vector<8x128xf32>, vector<128x128xf32>, vector<8x128xf32> -> vector<8x128xf32>
    %c0_9 = arith.constant 0 : index
    %c0_10 = arith.constant 0 : index
    %10 = vector.load %arg5[%c0_9, %c0_10] : memref<1x128xf32, #tpu.memory_space<vmem>>, vector<1x128xf32>
    %11 = vector.broadcast %10 : vector<1x128xf32> to vector<8x128xf32>
    %12 = arith.addf %9, %11 : vector<8x128xf32>
    %cst_11 = arith.constant 0.000000e+00 : f32
    %13 = vector.broadcast %cst_11 : f32 to vector<8x128xf32>
    %14 = arith.maximumf %12, %13 : vector<8x128xf32>
    %c0_12 = arith.constant 0 : index
    %c0_13 = arith.constant 0 : index
    %15 = vector.load %arg6[%c0_12, %c0_13] : memref<128x384xf32, #tpu.memory_space<vmem>>, vector<128x384xf32>
    %cst_14 = arith.constant dense<0.000000e+00> : vector<8x384xf32>
    %16 = tpu.matmul %14, %15, %cst_14 {dimension_numbers = #tpu.dot_dimension_numbers<[1], [0], [0], [1], [0, 0, 1, 1], [], []>} : vector<8x128xf32>, vector<128x384xf32>, vector<8x384xf32> -> vector<8x384xf32>
    %c0_15 = arith.constant 0 : index
    %c0_16 = arith.constant 0 : index
    %17 = vector.load %arg7[%c0_15, %c0_16] : memref<1x384xf32, #tpu.memory_space<vmem>>, vector<1x384xf32>
    %18 = vector.broadcast %17 : vector<1x384xf32> to vector<8x384xf32>
    %19 = arith.addf %16, %18 : vector<8x384xf32>
    %20 = arith.negf %19 : vector<8x384xf32>
    %21 = math.exp %20 : vector<8x384xf32>
    %cst_17 = arith.constant 1.000000e+00 : f32
    %22 = vector.broadcast %cst_17 : f32 to vector<8x384xf32>
    %23 = arith.addf %22, %21 : vector<8x384xf32>
    %24 = arith.divf %22, %23 : vector<8x384xf32>
    %c0_18 = arith.constant 0 : index
    %c0_19 = arith.constant 0 : index
    %25 = vector.load %arg8[%c0_18, %c0_19] : memref<384x384xf32, #tpu.memory_space<vmem>>, vector<384x384xf32>
    %cst_20 = arith.constant dense<0.000000e+00> : vector<8x384xf32>
    %26 = tpu.matmul %24, %25, %cst_20 {dimension_numbers = #tpu.dot_dimension_numbers<[1], [0], [0], [1], [0, 0, 1, 1], [], []>} : vector<8x384xf32>, vector<384x384xf32>, vector<8x384xf32> -> vector<8x384xf32>
    %c0_21 = arith.constant 0 : index
    %c0_22 = arith.constant 0 : index
    %27 = vector.load %arg9[%c0_21, %c0_22] : memref<8x384xf32, #tpu.memory_space<vmem>>, vector<8x384xf32>
    tpu.vector_store %arg9[%c0_21, %c0_22], %26 {strides = array<i32>} : memref<8x384xf32, #tpu.memory_space<vmem>>, vector<8x384xf32>,
    return
  }
  func.func @transform_0(%arg0: i32) -> (i32, i32) {
    %c0_i32 = arith.constant 0 : i32
    %c0_i32_0 = arith.constant 0 : i32
    return %arg0, %c0_i32 : i32, i32
  }
  func.func @transform_1(%arg0: i32) -> (i32, i32) {
    %c0_i32 = arith.constant 0 : i32
    %c0_i32_0 = arith.constant 0 : i32
    %c0_i32_1 = arith.constant 0 : i32
    return %c0_i32, %c0_i32_0 : i32, i32
  }
  func.func @transform_2(%arg0: i32) -> (i32, i32) {
    %c0_i32 = arith.constant 0 : i32
    %c0_i32_0 = arith.constant 0 : i32
    %c0_i32_1 = arith.constant 0 : i32
    return %c0_i32, %c0_i32_0 : i32, i32
  }
  func.func @transform_3(%arg0: i32) -> (i32, i32) {
    %c0_i32 = arith.constant 0 : i32
    %c0_i32_0 = arith.constant 0 : i32
    %c0_i32_1 = arith.constant 0 : i32
    return %c0_i32, %c0_i32_0 : i32, i32
  }
  func.func @transform_4(%arg0: i32) -> (i32, i32) {
    %c0_i32 = arith.constant 0 : i32
    %c0_i32_0 = arith.constant 0 : i32
    %c0_i32_1 = arith.constant 0 : i32
    return %c0_i32, %c0_i32_0 : i32, i32
  }
  func.func @transform_5(%arg0: i32) -> (i32, i32) {
    %c0_i32 = arith.constant 0 : i32
    %c0_i32_0 = arith.constant 0 : i32
    %c0_i32_1 = arith.constant 0 : i32
    return %c0_i32, %c0_i32_0 : i32, i32
  }
  func.func @transform_6(%arg0: i32) -> (i32, i32) {
    %c0_i32 = arith.constant 0 : i32
    %c0_i32_0 = arith.constant 0 : i32
    %c0_i32_1 = arith.constant 0 : i32
    return %c0_i32, %c0_i32_0 : i32, i32
  }
  func.func @transform_7(%arg0: i32) -> (i32, i32) {
    %c0_i32 = arith.constant 0 : i32
    %c0_i32_0 = arith.constant 0 : i32
    %c0_i32_1 = arith.constant 0 : i32
    return %c0_i32, %c0_i32_0 : i32, i32
  }
  func.func @transform_8(%arg0: i32) -> (i32, i32) {
    %c0_i32 = arith.constant 0 : i32
    %c0_i32_0 = arith.constant 0 : i32
    return %arg0, %c0_i32 : i32, i32
  }
}

</mosaic_0001>

<llo_original>
// kernel: tpu_custom_call.1
$region0: #{tpu_custom_call.1}
  #allocation0 [shape = 'u32[]', space=smem, size = 0x4, offset = 0x4, fixed_abs, tag = 'smem constant byte address 0x4 - core index']
  #allocation1 [shape = 'u32[144,128]{1,0:T(1,128)}', space=vmem, size = 0x12000, scoped, tag = 'internal scratch']
  %s0 = inlined_call_operand.hbm [shape: f32[8,128], index: 0, kind: input, shape index: {}]
  %s1 = inlined_call_operand.hbm [shape: f32[128,128], index: 1, kind: input, shape index: {}]
  %s2 = inlined_call_operand.vmem [shape: f32[1,128], index: 2, kind: input, shape index: {}]
  %s3 = inlined_call_operand.hbm [shape: f32[128,128], index: 3, kind: input, shape index: {}]
  %s4 = inlined_call_operand.vmem [shape: f32[1,128], index: 4, kind: input, shape index: {}]
  %s5 = inlined_call_operand.hbm [shape: f32[128,384], index: 5, kind: input, shape index: {}]
  %s6 = inlined_call_operand.vmem [shape: f32[1,384], index: 6, kind: input, shape index: {}]
  %s7 = inlined_call_operand.hbm [shape: f32[384,384], index: 7, kind: input, shape index: {}]
  %s8 = inlined_call_operand.hbm [shape: f32[8,384], index: 8, kind: output, shape index: {}]
  %s9 = sld [smem:[#allocation0]]
  $region62: #{tpu_custom_call.1} parent=0
    _
  %s11 = ssub.s32 1, %s9
  %s12 = scalar_select 0, %s11, %s9
  $region1: #{tpu_custom_call.1} parent=0
    #allocation2 [shape = 'u8[4096]{0}', space=vmem, size = 0x1000, scoped, tag = 'input window, operand 0, single buffered']
    #allocation3 [shape = 's32[1]{0}', space=sflag, size = 0x4, scoped, tag = 'scoped memory for tpu_custom_call.1']
    #allocation4 [shape = 's32[1]{0}', space=sflag, size = 0x4, scoped, tag = 'scoped memory for tpu_custom_call.1']
    #allocation5 [shape = 'u8[65536]{0}', space=vmem, size = 0x10000, scoped, tag = 'input window, operand 1, single buffered']
    #allocation6 [shape = 's32[1]{0}', space=sflag, size = 0x4, scoped, tag = 'scoped memory for tpu_custom_call.1']
    #allocation7 [shape = 'u8[65536]{0}', space=vmem, size = 0x10000, scoped, tag = 'input window, operand 3, single buffered']
    #allocation8 [shape = 'u8[196608]{0}', space=vmem, size = 0x30000, scoped, tag = 'input window, operand 5, single buffered']
    #allocation9 [shape = 's32[1]{0}', space=sflag, size = 0x4, scoped, tag = 'scoped memory for tpu_custom_call.1']
    #allocation10 [shape = 'u8[589824]{0}', space=vmem, size = 0x90000, scoped, tag = 'input window, operand 7, single buffered']
    #allocation11 [shape = 'u8[12288]{0}', space=vmem, size = 0x3000, scoped, tag = 'output window, operand 0, single buffered']
    %13 = vsyncpa [#allocation3], 0
    %14 = vsyncpa [#allocation6], 0
    %15 = vsyncpa [#allocation9], 0
    %16 = vsyncpa [#allocation4], 0
    // Predicated region
    $region2: #{tpu_custom_call.1} parent=1 // pred_check
      _
    $region3: #{tpu_custom_call.1} parent=1 // pred_check_branch
      %18 = sbr.rel (0) target = $region5
    $region4: #{tpu_custom_call.1} parent=1 // pred_region
      %s20 = ssub.s32 128, 128
      %21 = vsyncadd [#allocation3], %s20
      %s23 = sshll.u32 [#allocation2], 4
      %s24 = int_to_ptr.vmem [resolvable:$true] %s23
      %26 = dma.hbm_to_vmem [thread:$0]  %s0, 128, %s24, [#allocation3]
    $region5: #{tpu_custom_call.1} parent=1 // pred_fallthru
      _
    // Predicated region
    $region6: #{tpu_custom_call.1} parent=1 // pred_check
      _
    $region7: #{tpu_custom_call.1} parent=1 // pred_check_branch
      %28 = sbr.rel (0) target = $region9
    $region8: #{tpu_custom_call.1} parent=1 // pred_region
      %s30 = ssub.s32 2048, 2048
      %31 = vsyncadd [#allocation6], %s30
      %s32 = sshll.u32 [#allocation5], 4
      %s33 = int_to_ptr.vmem [resolvable:$true] %s32
      %38 = dma.hbm_to_vmem [thread:$0]  %s1, 2048, %s33, [#allocation6], 128, 128, 8
    $region9: #{tpu_custom_call.1} parent=1 // pred_fallthru
      _
    // Predicated region
    $region10: #{tpu_custom_call.1} parent=1 // pred_check
      _
    $region11: #{tpu_custom_call.1} parent=1 // pred_check_branch
      %40 = sbr.rel (0) target = $region13
    $region12: #{tpu_custom_call.1} parent=1 // pred_region
      _
    $region13: #{tpu_custom_call.1} parent=1 // pred_fallthru
      _
    // Predicated region
    $region14: #{tpu_custom_call.1} parent=1 // pred_check
      _
    $region15: #{tpu_custom_call.1} parent=1 // pred_check_branch
      %42 = sbr.rel (0) target = $region17
    $region16: #{tpu_custom_call.1} parent=1 // pred_region
      %s44 = ssub.s32 2048, 2048
      %45 = vsyncadd [#allocation6], %s44
      %s46 = sshll.u32 [#allocation7], 4
      %s47 = int_to_ptr.vmem [resolvable:$true] %s46
      %52 = dma.hbm_to_vmem [thread:$0]  %s3, 2048, %s47, [#allocation6], 128, 128, 8
    $region17: #{tpu_custom_call.1} parent=1 // pred_fallthru
      _
    // Predicated region
    $region18: #{tpu_custom_call.1} parent=1 // pred_check
      _
    $region19: #{tpu_custom_call.1} parent=1 // pred_check_branch
      %54 = sbr.rel (0) target = $region21
    $region20: #{tpu_custom_call.1} parent=1 // pred_region
      _
    $region21: #{tpu_custom_call.1} parent=1 // pred_fallthru
      _
    // Predicated region
    $region22: #{tpu_custom_call.1} parent=1 // pred_check
      _
    $region23: #{tpu_custom_call.1} parent=1 // pred_check_branch
      %56 = sbr.rel (0) target = $region25
    $region24: #{tpu_custom_call.1} parent=1 // pred_region
      %s58 = ssub.s32 6144, 6144
      %59 = vsyncadd [#allocation9], %s58
      %s60 = sshll.u32 [#allocation8], 4
      %s61 = int_to_ptr.vmem [resolvable:$true] %s60
      %66 = dma.hbm_to_vmem [thread:$0]  %s5, 6144, %s61, [#allocation9], 384, 384, 24
    $region25: #{tpu_custom_call.1} parent=1 // pred_fallthru
      _
    // Predicated region
    $region26: #{tpu_custom_call.1} parent=1 // pred_check
      _
    $region27: #{tpu_custom_call.1} parent=1 // pred_check_branch
      %68 = sbr.rel (0) target = $region29
    $region28: #{tpu_custom_call.1} parent=1 // pred_region
      _
    $region29: #{tpu_custom_call.1} parent=1 // pred_fallthru
      _
    // Predicated region
    $region30: #{tpu_custom_call.1} parent=1 // pred_check
      _
    $region31: #{tpu_custom_call.1} parent=1 // pred_check_branch
      %70 = sbr.rel (0) target = $region33
    $region32: #{tpu_custom_call.1} parent=1 // pred_region
      %s72 = ssub.s32 18432, 18432
      %73 = vsyncadd [#allocation9], %s72
      %s74 = sshll.u32 [#allocation10], 4
      %s75 = int_to_ptr.vmem [resolvable:$true] %s74
      %80 = dma.hbm_to_vmem [thread:$0]  %s7, 18432, %s75, [#allocation9], 384, 384, 24
    $region33: #{tpu_custom_call.1} parent=1 // pred_fallthru
      _
    // Predicated region
    $region34: #{tpu_custom_call.1} parent=1 // pred_check
      _
    $region35: #{tpu_custom_call.1} parent=1 // pred_check_branch
      %82 = sbr.rel (0) target = $region37
    $region36: #{tpu_custom_call.1} parent=1 // pred_region
      %83 = dma.done [#allocation3], 128
    $region37: #{tpu_custom_call.1} parent=1 // pred_fallthru
      _
    // Predicated region
    $region38: #{tpu_custom_call.1} parent=1 // pred_check
      _
    $region39: #{tpu_custom_call.1} parent=1 // pred_check_branch
      %85 = sbr.rel (0) target = $region41
    $region40: #{tpu_custom_call.1} parent=1 // pred_region
      %86 = dma.done [#allocation6], 2048
    $region41: #{tpu_custom_call.1} parent=1 // pred_fallthru
      _
    // Predicated region
    $region42: #{tpu_custom_call.1} parent=1 // pred_check
      _
    $region43: #{tpu_custom_call.1} parent=1 // pred_check_branch
      %88 = sbr.rel (0) target = $region45
    $region44: #{tpu_custom_call.1} parent=1 // pred_region
      %89 = dma.done [#allocation6], 2048
    $region45: #{tpu_custom_call.1} parent=1 // pred_fallthru
      _
    // Predicated region
    $region46: #{tpu_custom_call.1} parent=1 // pred_check
      _
    $region47: #{tpu_custom_call.1} parent=1 // pred_check_branch
      %91 = sbr.rel (0) target = $region49
    $region48: #{tpu_custom_call.1} parent=1 // pred_region
      %92 = dma.done [#allocation9], 6144
    $region49: #{tpu_custom_call.1} parent=1 // pred_fallthru
      _
    // Predicated region
    $region50: #{tpu_custom_call.1} parent=1 // pred_check
      _
    $region51: #{tpu_custom_call.1} parent=1 // pred_check_branch
      %94 = sbr.rel (0) target = $region53
    $region52: #{tpu_custom_call.1} parent=1 // pred_region
      %95 = dma.done [#allocation9], 18432
    $region53: #{tpu_custom_call.1} parent=1 // pred_fallthru
      _
    %v96 = vld [vmem:[#allocation2] sm:$0xff]
    %v97 = vld [vmem:[#allocation5] sm:$0xff]
    %v98 = vld [vmem:[#allocation5 + $0x8] sm:$0xff]
    %v99 = vld [vmem:[#allocation5 + $0x10] sm:$0xff]
    %v100 = vld [vmem:[#allocation5 + $0x18] sm:$0xff]
    %v101 = vld [vmem:[#allocation5 + $0x20] sm:$0xff]
    %v102 = vld [vmem:[#allocation5 + $0x28] sm:$0xff]
    %v103 = vld [vmem:[#allocation5 + $0x30] sm:$0xff]
    %v104 = vld [vmem:[#allocation5 + $0x38] sm:$0xff]
    %v105 = vld [vmem:[#allocation5 + $0x40] sm:$0xff]
    %v106 = vld [vmem:[#allocation5 + $0x48] sm:$0xff]
    %v107 = vld [vmem:[#allocation5 + $0x50] sm:$0xff]
    %v108 = vld [vmem:[#allocation5 + $0x58] sm:$0xff]
    %v109 = vld [vmem:[#allocation5 + $0x60] sm:$0xff]
    %v110 = vld [vmem:[#allocation5 + $0x68] sm:$0xff]
    %v111 = vld [vmem:[#allocation5 + $0x70] sm:$0xff]
    %v112 = vld [vmem:[#allocation5 + $0x78] sm:$0xff]
    %v113 = vld [vmem:[%s2] sm:$0x1]
    %v115 = vlaneseq
    %v116 = vshrl.u32 %v115, 7
    %v117 = vsub.s32 0, %v116
    %v118 = vrot.slane %v113, %v117
    %120 = vmatprep.subr.mxu0 0.0
    %121 = vmatpush1.msra.mxu0 %v112
    %122 = vmatprep.subr.mxu0 0.0
    %123 = vmatpush1.msra.mxu0 %v111
    %124 = vmatprep.subr.mxu0 0.0
    %125 = vmatpush1.msra.mxu0 %v110
    %126 = vmatprep.subr.mxu0 0.0
    %127 = vmatpush1.msra.mxu0 %v109
    %128 = vmatprep.subr.mxu0 0.0
    %129 = vmatpush1.msra.mxu0 %v108
    %130 = vmatprep.subr.mxu0 0.0
    %131 = vmatpush1.msra.mxu0 %v107
    %132 = vmatprep.subr.mxu0 0.0
    %133 = vmatpush1.msra.mxu0 %v106
    %134 = vmatprep.subr.mxu0 0.0
    %135 = vmatpush1.msra.mxu0 %v105
    %136 = vmatprep.subr.mxu0 0.0
    %137 = vmatpush1.msra.mxu0 %v104
    %138 = vmatprep.subr.mxu0 0.0
    %139 = vmatpush1.msra.mxu0 %v103
    %140 = vmatprep.subr.mxu0 0.0
    %141 = vmatpush1.msra.mxu0 %v102
    %142 = vmatprep.subr.mxu0 0.0
    %143 = vmatpush1.msra.mxu0 %v101
    %144 = vmatprep.subr.mxu0 0.0
    %145 = vmatpush1.msra.mxu0 %v100
    %146 = vmatprep.subr.mxu0 0.0
    %147 = vmatpush1.msra.mxu0 %v99
    %148 = vmatprep.subr.mxu0 0.0
    %149 = vmatpush1.msra.mxu0 %v98
    %150 = vmatprep.subr.mxu0 0.0
    %151 = vmatpush1.msra.mxu0 %v97
    %152 = vmatprep.subr.mxu0 0.0
    %153 = vmatpush2.msra.mxu0 0.0
    %154 = vmatprep.subr.mxu0 0.0
    %155 = vmatpush2.msra.mxu0 0.0
    %156 = vmatprep.subr.mxu0 0.0
    %157 = vmatpush2.msra.mxu0 0.0
    %158 = vmatprep.subr.mxu0 0.0
    %159 = vmatpush2.msra.mxu0 0.0
    %160 = vmatprep.subr.mxu0 0.0
    %161 = vmatpush2.msra.mxu0 0.0
    %162 = vmatprep.subr.mxu0 0.0
    %163 = vmatpush2.msra.mxu0 0.0
    %164 = vmatprep.subr.mxu0 0.0
    %165 = vmatpush2.msra.mxu0 0.0
    %166 = vmatprep.subr.mxu0 0.0
    %167 = vmatpush2.msra.mxu0 0.0
    %168 = vmatprep.subr.mxu0 0.0
    %169 = vmatpush2.msra.mxu0 0.0
    %170 = vmatprep.subr.mxu0 0.0
    %171 = vmatpush2.msra.mxu0 0.0
    %172 = vmatprep.subr.mxu0 0.0
    %173 = vmatpush2.msra.mxu0 0.0
    %174 = vmatprep.subr.mxu0 0.0
    %175 = vmatpush2.msra.mxu0 0.0
    %176 = vmatprep.subr.mxu0 0.0
    %177 = vmatpush2.msra.mxu0 0.0
    %178 = vmatprep.subr.mxu0 0.0
    %179 = vmatpush2.msra.mxu0 0.0
    %180 = vmatprep.subr.mxu0 0.0
    %181 = vmatpush2.msra.mxu0 0.0
    %182 = vmatprep.subr.mxu0 0.0
    %183 = vmatpush2.msra.mxu0 0.0
    %184 = vmatprep.mubr.f32.mxu0 0.0
    %185 = vmatmul.mubr.f32.gmra.mxu0 %v96
    %v186 = vpop.f32.mrf.mxu0
    %v187 = vadd.f32 %v118, %v186
    %v188 = vpop.f32.mrf.mxu0
    %189 = vdwg.mxu0
    %v190 = vmax.f32 %v187, 0.0
    %v191 = vld [vmem:[#allocation7] sm:$0xff]
    %v192 = vld [vmem:[#allocation7 + $0x8] sm:$0xff]
    %v193 = vld [vmem:[#allocation7 + $0x10] sm:$0xff]
    %v194 = vld [vmem:[#allocation7 + $0x18] sm:$0xff]
    %v195 = vld [vmem:[#allocation7 + $0x20] sm:$0xff]
    %v196 = vld [vmem:[#allocation7 + $0x28] sm:$0xff]
    %v197 = vld [vmem:[#allocation7 + $0x30] sm:$0xff]
    %v198 = vld [vmem:[#allocation7 + $0x38] sm:$0xff]
    %v199 = vld [vmem:[#allocation7 + $0x40] sm:$0xff]
    %v200 = vld [vmem:[#allocation7 + $0x48] sm:$0xff]
    %v201 = vld [vmem:[#allocation7 + $0x50] sm:$0xff]
    %v202 = vld [vmem:[#allocation7 + $0x58] sm:$0xff]
    %v203 = vld [vmem:[#allocation7 + $0x60] sm:$0xff]
    %v204 = vld [vmem:[#allocation7 + $0x68] sm:$0xff]
    %v205 = vld [vmem:[#allocation7 + $0x70] sm:$0xff]
    %v206 = vld [vmem:[#allocation7 + $0x78] sm:$0xff]
    %v207 = vld [vmem:[%s4] sm:$0x1]
    %v209 = vlaneseq
    %v210 = vshrl.u32 %v209, 7
    %v211 = vsub.s32 0, %v210
    %v212 = vrot.slane %v207, %v211
    %214 = vmatprep.subr.mxu0 0.0
    %215 = vmatpush1.msra.mxu0 %v206
    %216 = vmatprep.subr.mxu0 0.0
    %217 = vmatpush1.msra.mxu0 %v205
    %218 = vmatprep.subr.mxu0 0.0
    %219 = vmatpush1.msra.mxu0 %v204
    %220 = vmatprep.subr.mxu0 0.0
    %221 = vmatpush1.msra.mxu0 %v203
    %222 = vmatprep.subr.mxu0 0.0
    %223 = vmatpush1.msra.mxu0 %v202
    %224 = vmatprep.subr.mxu0 0.0
    %225 = vmatpush1.msra.mxu0 %v201
    %226 = vmatprep.subr.mxu0 0.0
    %227 = vmatpush1.msra.mxu0 %v200
    %228 = vmatprep.subr.mxu0 0.0
    %229 = vmatpush1.msra.mxu0 %v199
    %230 = vmatprep.subr.mxu0 0.0
    %231 = vmatpush1.msra.mxu0 %v198
    %232 = vmatprep.subr.mxu0 0.0
    %233 = vmatpush1.msra.mxu0 %v197
    %234 = vmatprep.subr.mxu0 0.0
    %235 = vmatpush1.msra.mxu0 %v196
    %236 = vmatprep.subr.mxu0 0.0
    %237 = vmatpush1.msra.mxu0 %v195
    %238 = vmatprep.subr.mxu0 0.0
    %239 = vmatpush1.msra.mxu0 %v194
    %240 = vmatprep.subr.mxu0 0.0
    %241 = vmatpush1.msra.mxu0 %v193
    %242 = vmatprep.subr.mxu0 0.0
    %243 = vmatpush1.msra.mxu0 %v192
    %244 = vmatprep.subr.mxu0 0.0
    %245 = vmatpush1.msra.mxu0 %v191
    %246 = vmatprep.subr.mxu0 0.0
    %247 = vmatpush2.msra.mxu0 0.0
    %248 = vmatprep.subr.mxu0 0.0
    %249 = vmatpush2.msra.mxu0 0.0
    %250 = vmatprep.subr.mxu0 0.0
    %251 = vmatpush2.msra.mxu0 0.0
    %252 = vmatprep.subr.mxu0 0.0
    %253 = vmatpush2.msra.mxu0 0.0
    %254 = vmatprep.subr.mxu0 0.0
    %255 = vmatpush2.msra.mxu0 0.0
    %256 = vmatprep.subr.mxu0 0.0
    %257 = vmatpush2.msra.mxu0 0.0
    %258 = vmatprep.subr.mxu0 0.0
    %259 = vmatpush2.msra.mxu0 0.0
    %260 = vmatprep.subr.mxu0 0.0
    %261 = vmatpush2.msra.mxu0 0.0
    %262 = vmatprep.subr.mxu0 0.0
    %263 = vmatpush2.msra.mxu0 0.0
    %264 = vmatprep.subr.mxu0 0.0
    %265 = vmatpush2.msra.mxu0 0.0
    %266 = vmatprep.subr.mxu0 0.0
    %267 = vmatpush2.msra.mxu0 0.0
    %268 = vmatprep.subr.mxu0 0.0
    %269 = vmatpush2.msra.mxu0 0.0
    %270 = vmatprep.subr.mxu0 0.0
    %271 = vmatpush2.msra.mxu0 0.0
    %272 = vmatprep.subr.mxu0 0.0
    %273 = vmatpush2.msra.mxu0 0.0
    %274 = vmatprep.subr.mxu0 0.0
    %275 = vmatpush2.msra.mxu0 0.0
    %276 = vmatprep.subr.mxu0 0.0
    %277 = vmatpush2.msra.mxu0 0.0
    %278 = vmatprep.mubr.f32.mxu0 0.0
    %279 = vmatmul.mubr.f32.gmra.mxu0 %v190
    %v280 = vpop.f32.mrf.mxu0
    %v281 = vadd.f32 %v212, %v280
    %v282 = vpop.f32.mrf.mxu0
    %283 = vdwg.mxu0
    %v284 = vmax.f32 %v281, 0.0
    %v285 = vld [vmem:[#allocation8] sm:$0xff]
    %v286 = vld [vmem:[#allocation8 + $0x8] sm:$0xff]
    %v287 = vld [vmem:[#allocation8 + $0x10] sm:$0xff]
    %v288 = vld [vmem:[#allocation8 + $0x18] sm:$0xff]
    %v289 = vld [vmem:[#allocation8 + $0x20] sm:$0xff]
    %v290 = vld [vmem:[#allocation8 + $0x28] sm:$0xff]
    %v291 = vld [vmem:[#allocation8 + $0x30] sm:$0xff]
    %v292 = vld [vmem:[#allocation8 + $0x38] sm:$0xff]
    %v293 = vld [vmem:[#allocation8 + $0x40] sm:$0xff]
    %v294 = vld [vmem:[#allocation8 + $0x48] sm:$0xff]
    %v295 = vld [vmem:[#allocation8 + $0x50] sm:$0xff]
    %v296 = vld [vmem:[#allocation8 + $0x58] sm:$0xff]
    %v297 = vld [vmem:[#allocation8 + $0x60] sm:$0xff]
    %v298 = vld [vmem:[#allocation8 + $0x68] sm:$0xff]
    %v299 = vld [vmem:[#allocation8 + $0x70] sm:$0xff]
    %v300 = vld [vmem:[#allocation8 + $0x78] sm:$0xff]
    %v301 = vld [vmem:[#allocation8 + $0x80] sm:$0xff]
    %v302 = vld [vmem:[#allocation8 + $0x88] sm:$0xff]
    %v303 = vld [vmem:[#allocation8 + $0x90] sm:$0xff]
    %v304 = vld [vmem:[#allocation8 + $0x98] sm:$0xff]
    %v305 = vld [vmem:[#allocation8 + $0xa0] sm:$0xff]
    %v306 = vld [vmem:[#allocation8 + $0xa8] sm:$0xff]
    %v307 = vld [vmem:[#allocation8 + $0xb0] sm:$0xff]
    %v308 = vld [vmem:[#allocation8 + $0xb8] sm:$0xff]
    %v309 = vld [vmem:[#allocation8 + $0xc0] sm:$0xff]
    %v310 = vld [vmem:[#allocation8 + $0xc8] sm:$0xff]
    %v311 = vld [vmem:[#allocation8 + $0xd0] sm:$0xff]
    %v312 = vld [vmem:[#allocation8 + $0xd8] sm:$0xff]
    %v313 = vld [vmem:[#allocation8 + $0xe0] sm:$0xff]
    %v314 = vld [vmem:[#allocation8 + $0xe8] sm:$0xff]
    %v315 = vld [vmem:[#allocation8 + $0xf0] sm:$0xff]
    %v316 = vld [vmem:[#allocation8 + $0xf8] sm:$0xff]
    %v317 = vld [vmem:[#allocation8 + $0x100] sm:$0xff]
    %v318 = vld [vmem:[#allocation8 + $0x108] sm:$0xff]
    %v319 = vld [vmem:[#allocation8 + $0x110] sm:$0xff]
    %v320 = vld [vmem:[#allocation8 + $0x118] sm:$0xff]
    %v321 = vld [vmem:[#allocation8 + $0x120] sm:$0xff]
    %v322 = vld [vmem:[#allocation8 + $0x128] sm:$0xff]
    %v323 = vld [vmem:[#allocation8 + $0x130] sm:$0xff]
    %v324 = vld [vmem:[#allocation8 + $0x138] sm:$0xff]
    %v325 = vld [vmem:[#allocation8 + $0x140] sm:$0xff]
    %v326 = vld [vmem:[#allocation8 + $0x148] sm:$0xff]
    %v327 = vld [vmem:[#allocation8 + $0x150] sm:$0xff]
    %v328 = vld [vmem:[#allocation8 + $0x158] sm:$0xff]
    %v329 = vld [vmem:[#allocation8 + $0x160] sm:$0xff]
    %v330 = vld [vmem:[#allocation8 + $0x168] sm:$0xff]
    %v331 = vld [vmem:[#allocation8 + $0x170] sm:$0xff]
    %v332 = vld [vmem:[#allocation8 + $0x178] sm:$0xff]
    %v333 = vld [vmem:[%s6] sm:$0x7]
    %v335 = vlaneseq
    %v336 = vshrl.u32 %v335, 7
    %v337 = vsub.s32 0, %v336
    %v338 = vrot.slane %v333, %v337
    %v339 = vlaneseq
    %v340 = vshrl.u32 %v339, 7
    %v341 = vsub.s32 1, %v340
    %v342 = vrot.slane %v333, %v341
    %v343 = vlaneseq
    %v344 = vshrl.u32 %v343, 7
    %v345 = vsub.s32 2, %v344
    %v346 = vrot.slane %v333, %v345
    %350 = vmatprep.subr.mxu0 %v331
    %351 = vmatpush1.msra.mxu0 %v330
    %352 = vmatprep.subr.mxu0 %v328
    %353 = vmatpush1.msra.mxu0 %v327
    %354 = vmatprep.subr.mxu0 %v325
    %355 = vmatpush1.msra.mxu0 %v324
    %356 = vmatprep.subr.mxu0 %v322
    %357 = vmatpush1.msra.mxu0 %v321
    %358 = vmatprep.subr.mxu0 %v319
    %359 = vmatpush1.msra.mxu0 %v318
    %360 = vmatprep.subr.mxu0 %v316
    %361 = vmatpush1.msra.mxu0 %v315
    %362 = vmatprep.subr.mxu0 %v313
    %363 = vmatpush1.msra.mxu0 %v312
    %364 = vmatprep.subr.mxu0 %v310
    %365 = vmatpush1.msra.mxu0 %v309
    %366 = vmatprep.subr.mxu0 %v307
    %367 = vmatpush1.msra.mxu0 %v306
    %368 = vmatprep.subr.mxu0 %v304
    %369 = vmatpush1.msra.mxu0 %v303
    %370 = vmatprep.subr.mxu0 %v301
    %371 = vmatpush1.msra.mxu0 %v300
    %372 = vmatprep.subr.mxu0 %v298
    %373 = vmatpush1.msra.mxu0 %v297
    %374 = vmatprep.subr.mxu0 %v295
    %375 = vmatpush1.msra.mxu0 %v294
    %376 = vmatprep.subr.mxu0 %v292
    %377 = vmatpush1.msra.mxu0 %v291
    %378 = vmatprep.subr.mxu0 %v289
    %379 = vmatpush1.msra.mxu0 %v288
    %380 = vmatprep.subr.mxu0 %v286
    %381 = vmatpush1.msra.mxu0 %v285
    %382 = vmatprep.subr.mxu0 0.0
    %383 = vmatpush2.msra.mxu0 0.0
    %384 = vmatprep.subr.mxu0 0.0
    %385 = vmatpush2.msra.mxu0 0.0
    %386 = vmatprep.subr.mxu0 0.0
    %387 = vmatpush2.msra.mxu0 0.0
    %388 = vmatprep.subr.mxu0 0.0
    %389 = vmatpush2.msra.mxu0 0.0
    %390 = vmatprep.subr.mxu0 0.0
    %391 = vmatpush2.msra.mxu0 0.0
    %392 = vmatprep.subr.mxu0 0.0
    %393 = vmatpush2.msra.mxu0 0.0
    %394 = vmatprep.subr.mxu0 0.0
    %395 = vmatpush2.msra.mxu0 0.0
    %396 = vmatprep.subr.mxu0 0.0
    %397 = vmatpush2.msra.mxu0 0.0
    %398 = vmatprep.subr.mxu0 0.0
    %399 = vmatpush2.msra.mxu0 0.0
    %400 = vmatprep.subr.mxu0 0.0
    %401 = vmatpush2.msra.mxu0 0.0
    %402 = vmatprep.subr.mxu0 0.0
    %403 = vmatpush2.msra.mxu0 0.0
    %404 = vmatprep.subr.mxu0 0.0
    %405 = vmatpush2.msra.mxu0 0.0
    %406 = vmatprep.subr.mxu0 0.0
    %407 = vmatpush2.msra.mxu0 0.0
    %408 = vmatprep.subr.mxu0 0.0
    %409 = vmatpush2.msra.mxu0 0.0
    %410 = vmatprep.subr.mxu0 0.0
    %411 = vmatpush2.msra.mxu0 0.0
    %412 = vmatprep.subr.mxu0 0.0
    %413 = vmatpush2.msra.mxu0 0.0
    %414 = vmatprep.mubr.f32.mxu0 0.0
    %415 = vmatmul.mubr.f32.gmra.mxu0 %v284
    %v416 = vpop.f32.mrf.mxu0
    %v417 = vadd.f32 %v338, %v416
    %v418 = vpop.f32.mrf.mxu0
    %v419 = vadd.f32 %v342, %v418
    %420 = vdwg.mxu0
    %421 = vmatprep.subr.mxu0 0.0
    %422 = vmatpush1.msra.mxu0 %v332
    %423 = vmatprep.subr.mxu0 0.0
    %424 = vmatpush1.msra.mxu0 %v329
    %425 = vmatprep.subr.mxu0 0.0
    %426 = vmatpush1.msra.mxu0 %v326
    %427 = vmatprep.subr.mxu0 0.0
    %428 = vmatpush1.msra.mxu0 %v323
    %429 = vmatprep.subr.mxu0 0.0
    %430 = vmatpush1.msra.mxu0 %v320
    %431 = vmatprep.subr.mxu0 0.0
    %432 = vmatpush1.msra.mxu0 %v317
    %433 = vmatprep.subr.mxu0 0.0
    %434 = vmatpush1.msra.mxu0 %v314
    %435 = vmatprep.subr.mxu0 0.0
    %436 = vmatpush1.msra.mxu0 %v311
    %437 = vmatprep.subr.mxu0 0.0
    %438 = vmatpush1.msra.mxu0 %v308
    %439 = vmatprep.subr.mxu0 0.0
    %440 = vmatpush1.msra.mxu0 %v305
    %441 = vmatprep.subr.mxu0 0.0
    %442 = vmatpush1.msra.mxu0 %v302
    %443 = vmatprep.subr.mxu0 0.0
    %444 = vmatpush1.msra.mxu0 %v299
    %445 = vmatprep.subr.mxu0 0.0
    %446 = vmatpush1.msra.mxu0 %v296
    %447 = vmatprep.subr.mxu0 0.0
    %448 = vmatpush1.msra.mxu0 %v293
    %449 = vmatprep.subr.mxu0 0.0
    %450 = vmatpush1.msra.mxu0 %v290
    %451 = vmatprep.subr.mxu0 0.0
    %452 = vmatpush1.msra.mxu0 %v287
    %453 = vmatprep.subr.mxu0 0.0
    %454 = vmatpush2.msra.mxu0 0.0
    %455 = vmatprep.subr.mxu0 0.0
    %456 = vmatpush2.msra.mxu0 0.0
    %457 = vmatprep.subr.mxu0 0.0
    %458 = vmatpush2.msra.mxu0 0.0
    %459 = vmatprep.subr.mxu0 0.0
    %460 = vmatpush2.msra.mxu0 0.0
    %461 = vmatprep.subr.mxu0 0.0
    %462 = vmatpush2.msra.mxu0 0.0
    %463 = vmatprep.subr.mxu0 0.0
    %464 = vmatpush2.msra.mxu0 0.0
    %465 = vmatprep.subr.mxu0 0.0
    %466 = vmatpush2.msra.mxu0 0.0
    %467 = vmatprep.subr.mxu0 0.0
    %468 = vmatpush2.msra.mxu0 0.0
    %469 = vmatprep.subr.mxu0 0.0
    %470 = vmatpush2.msra.mxu0 0.0
    %471 = vmatprep.subr.mxu0 0.0
    %472 = vmatpush2.msra.mxu0 0.0
    %473 = vmatprep.subr.mxu0 0.0
    %474 = vmatpush2.msra.mxu0 0.0
    %475 = vmatprep.subr.mxu0 0.0
    %476 = vmatpush2.msra.mxu0 0.0
    %477 = vmatprep.subr.mxu0 0.0
    %478 = vmatpush2.msra.mxu0 0.0
    %479 = vmatprep.subr.mxu0 0.0
    %480 = vmatpush2.msra.mxu0 0.0
    %481 = vmatprep.subr.mxu0 0.0
    %482 = vmatpush2.msra.mxu0 0.0
    %483 = vmatprep.subr.mxu0 0.0
    %484 = vmatpush2.msra.mxu0 0.0
    %485 = vmatprep.mubr.f32.mxu0 0.0
    %486 = vmatmul.mubr.f32.gmra.mxu0 %v284
    %v487 = vpop.f32.mrf.mxu0
    %v488 = vadd.f32 %v346, %v487
    %v489 = vpop.f32.mrf.mxu0
    %490 = vdwg.mxu0
    %v491 = vxor.u32 %v417, 2147483648
    %v492 = vxor.u32 %v419, 2147483648
    %v493 = vxor.u32 %v488, 2147483648
    %v494 = vmul.f32 %v491, 1.442695
    %v495 = vpow.pop %v494
    %v496 = vmul.f32 %v492, 1.442695
    %v497 = vpow.pop %v496
    %v498 = vmul.f32 %v493, 1.442695
    %v499 = vpow.pop %v498
    %v500 = vadd.f32 %v495, 1.0
    %v501 = vadd.f32 %v497, 1.0
    %v502 = vadd.f32 %v499, 1.0
    %v503 = vrcp.pop %v500
    %v504 = vmul.f32 1.0, %v503
    %v505 = vrcp.pop %v501
    %v506 = vmul.f32 1.0, %v505
    %v507 = vrcp.pop %v502
    %v508 = vmul.f32 1.0, %v507
    %v509 = vld [vmem:[#allocation10] sm:$0xff]
    %v510 = vld [vmem:[#allocation10 + $0x8] sm:$0xff]
    %v511 = vld [vmem:[#allocation10 + $0x10] sm:$0xff]
    %v512 = vld [vmem:[#allocation10 + $0x18] sm:$0xff]
    %v513 = vld [vmem:[#allocation10 + $0x20] sm:$0xff]
    %v514 = vld [vmem:[#allocation10 + $0x28] sm:$0xff]
    %v515 = vld [vmem:[#allocation10 + $0x30] sm:$0xff]
    %v516 = vld [vmem:[#allocation10 + $0x38] sm:$0xff]
    %v517 = vld [vmem:[#allocation10 + $0x40] sm:$0xff]
    %v518 = vld [vmem:[#allocation10 + $0x48] sm:$0xff]
    %v519 = vld [vmem:[#allocation10 + $0x50] sm:$0xff]
    %v520 = vld [vmem:[#allocation10 + $0x58] sm:$0xff]
    %v521 = vld [vmem:[#allocation10 + $0x60] sm:$0xff]
    %v522 = vld [vmem:[#allocation10 + $0x68] sm:$0xff]
    %v523 = vld [vmem:[#allocation10 + $0x70] sm:$0xff]
    %v524 = vld [vmem:[#allocation10 + $0x78] sm:$0xff]
    %v525 = vld [vmem:[#allocation10 + $0x80] sm:$0xff]
    %v526 = vld [vmem:[#allocation10 + $0x88] sm:$0xff]
    %v527 = vld [vmem:[#allocation10 + $0x90] sm:$0xff]
    %v528 = vld [vmem:[#allocation10 + $0x98] sm:$0xff]
    %v529 = vld [vmem:[#allocation10 + $0xa0] sm:$0xff]
    %v530 = vld [vmem:[#allocation10 + $0xa8] sm:$0xff]
    %v531 = vld [vmem:[#allocation10 + $0xb0] sm:$0xff]
    %v532 = vld [vmem:[#allocation10 + $0xb8] sm:$0xff]
    %v533 = vld [vmem:[#allocation10 + $0xc0] sm:$0xff]
    %v534 = vld [vmem:[#allocation10 + $0xc8] sm:$0xff]
    %v535 = vld [vmem:[#allocation10 + $0xd0] sm:$0xff]
    %v536 = vld [vmem:[#allocation10 + $0xd8] sm:$0xff]
    %v537 = vld [vmem:[#allocation10 + $0xe0] sm:$0xff]
    %v538 = vld [vmem:[#allocation10 + $0xe8] sm:$0xff]
    %v539 = vld [vmem:[#allocation10 + $0xf0] sm:$0xff]
    %v540 = vld [vmem:[#allocation10 + $0xf8] sm:$0xff]
    %v541 = vld [vmem:[#allocation10 + $0x100] sm:$0xff]
    %v542 = vld [vmem:[#allocation10 + $0x108] sm:$0xff]
    %v543 = vld [vmem:[#allocation10 + $0x110] sm:$0xff]
    %v544 = vld [vmem:[#allocation10 + $0x118] sm:$0xff]
    %v545 = vld [vmem:[#allocation10 + $0x120] sm:$0xff]
    %v546 = vld [vmem:[#allocation10 + $0x128] sm:$0xff]
    %v547 = vld [vmem:[#allocation10 + $0x130] sm:$0xff]
    %v548 = vld [vmem:[#allocation10 + $0x138] sm:$0xff]
    %v549 = vld [vmem:[#allocation10 + $0x140] sm:$0xff]
    %v550 = vld [vmem:[#allocation10 + $0x148] sm:$0xff]
    %v551 = vld [vmem:[#allocation10 + $0x150] sm:$0xff]
    %v552 = vld [vmem:[#allocation10 + $0x158] sm:$0xff]
    %v553 = vld [vmem:[#allocation10 + $0x160] sm:$0xff]
    %v554 = vld [vmem:[#allocation10 + $0x168] sm:$0xff]
    %v555 = vld [vmem:[#allocation10 + $0x170] sm:$0xff]
    %v556 = vld [vmem:[#allocation10 + $0x178] sm:$0xff]
    %v557 = vld [vmem:[#allocation10 + $0x180] sm:$0xff]
    %v558 = vld [vmem:[#allocation10 + $0x188] sm:$0xff]
    %v559 = vld [vmem:[#allocation10 + $0x190] sm:$0xff]
    %v560 = vld [vmem:[#allocation10 + $0x198] sm:$0xff]
    %v561 = vld [vmem:[#allocation10 + $0x1a0] sm:$0xff]
    %v562 = vld [vmem:[#allocation10 + $0x1a8] sm:$0xff]
    %v563 = vld [vmem:[#allocation10 + $0x1b0] sm:$0xff]
    %v564 = vld [vmem:[#allocation10 + $0x1b8] sm:$0xff]
    %v565 = vld [vmem:[#allocation10 + $0x1c0] sm:$0xff]
    %v566 = vld [vmem:[#allocation10 + $0x1c8] sm:$0xff]
    %v567 = vld [vmem:[#allocation10 + $0x1d0] sm:$0xff]
    %v568 = vld [vmem:[#allocation10 + $0x1d8] sm:$0xff]
    %v569 = vld [vmem:[#allocation10 + $0x1e0] sm:$0xff]
    %v570 = vld [vmem:[#allocation10 + $0x1e8] sm:$0xff]
    %v571 = vld [vmem:[#allocation10 + $0x1f0] sm:$0xff]
    %v572 = vld [vmem:[#allocation10 + $0x1f8] sm:$0xff]
    %v573 = vld [vmem:[#allocation10 + $0x200] sm:$0xff]
    %v574 = vld [vmem:[#allocation10 + $0x208] sm:$0xff]
    %v575 = vld [vmem:[#allocation10 + $0x210] sm:$0xff]
    %v576 = vld [vmem:[#allocation10 + $0x218] sm:$0xff]
    %v577 = vld [vmem:[#allocation10 + $0x220] sm:$0xff]
    %v578 = vld [vmem:[#allocation10 + $0x228] sm:$0xff]
    %v579 = vld [vmem:[#allocation10 + $0x230] sm:$0xff]
    %v580 = vld [vmem:[#allocation10 + $0x238] sm:$0xff]
    %v581 = vld [vmem:[#allocation10 + $0x240] sm:$0xff]
    %v582 = vld [vmem:[#allocation10 + $0x248] sm:$0xff]
    %v583 = vld [vmem:[#allocation10 + $0x250] sm:$0xff]
    %v584 = vld [vmem:[#allocation10 + $0x258] sm:$0xff]
    %v585 = vld [vmem:[#allocation10 + $0x260] sm:$0xff]
    %v586 = vld [vmem:[#allocation10 + $0x268] sm:$0xff]
    %v587 = vld [vmem:[#allocation10 + $0x270] sm:$0xff]
    %v588 = vld [vmem:[#allocation10 + $0x278] sm:$0xff]
    %v589 = vld [vmem:[#allocation10 + $0x280] sm:$0xff]
    %v590 = vld [vmem:[#allocation10 + $0x288] sm:$0xff]
    %v591 = vld [vmem:[#allocation10 + $0x290] sm:$0xff]
    %v592 = vld [vmem:[#allocation10 + $0x298] sm:$0xff]
    %v593 = vld [vmem:[#allocation10 + $0x2a0] sm:$0xff]
    %v594 = vld [vmem:[#allocation10 + $0x2a8] sm:$0xff]
    %v595 = vld [vmem:[#allocation10 + $0x2b0] sm:$0xff]
    %v596 = vld [vmem:[#allocation10 + $0x2b8] sm:$0xff]
    %v597 = vld [vmem:[#allocation10 + $0x2c0] sm:$0xff]
    %v598 = vld [vmem:[#allocation10 + $0x2c8] sm:$0xff]
    %v599 = vld [vmem:[#allocation10 + $0x2d0] sm:$0xff]
    %v600 = vld [vmem:[#allocation10 + $0x2d8] sm:$0xff]
    %v601 = vld [vmem:[#allocation10 + $0x2e0] sm:$0xff]
    %v602 = vld [vmem:[#allocation10 + $0x2e8] sm:$0xff]
    %v603 = vld [vmem:[#allocation10 + $0x2f0] sm:$0xff]
    %v604 = vld [vmem:[#allocation10 + $0x2f8] sm:$0xff]
    %v605 = vld [vmem:[#allocation10 + $0x300] sm:$0xff]
    %v606 = vld [vmem:[#allocation10 + $0x308] sm:$0xff]
    %v607 = vld [vmem:[#allocation10 + $0x310] sm:$0xff]
    %v608 = vld [vmem:[#allocation10 + $0x318] sm:$0xff]
    %v609 = vld [vmem:[#allocation10 + $0x320] sm:$0xff]
    %v610 = vld [vmem:[#allocation10 + $0x328] sm:$0xff]
    %v611 = vld [vmem:[#allocation10 + $0x330] sm:$0xff]
    %v612 = vld [vmem:[#allocation10 + $0x338] sm:$0xff]
    %v613 = vld [vmem:[#allocation10 + $0x340] sm:$0xff]
    %v614 = vld [vmem:[#allocation10 + $0x348] sm:$0xff]
    %v615 = vld [vmem:[#allocation10 + $0x350] sm:$0xff]
    %v616 = vld [vmem:[#allocation10 + $0x358] sm:$0xff]
    %v617 = vld [vmem:[#allocation10 + $0x360] sm:$0xff]
    %v618 = vld [vmem:[#allocation10 + $0x368] sm:$0xff]
    %v619 = vld [vmem:[#allocation10 + $0x370] sm:$0xff]
    %v620 = vld [vmem:[#allocation10 + $0x378] sm:$0xff]
    %v621 = vld [vmem:[#allocation10 + $0x380] sm:$0xff]
    %v622 = vld [vmem:[#allocation10 + $0x388] sm:$0xff]
    %v623 = vld [vmem:[#allocation10 + $0x390] sm:$0xff]
    %v624 = vld [vmem:[#allocation10 + $0x398] sm:$0xff]
    %v625 = vld [vmem:[#allocation10 + $0x3a0] sm:$0xff]
    %v626 = vld [vmem:[#allocation10 + $0x3a8] sm:$0xff]
    %v627 = vld [vmem:[#allocation10 + $0x3b0] sm:$0xff]
    %v628 = vld [vmem:[#allocation10 + $0x3b8] sm:$0xff]
    %v629 = vld [vmem:[#allocation10 + $0x3c0] sm:$0xff]
    %v630 = vld [vmem:[#allocation10 + $0x3c8] sm:$0xff]
    %v631 = vld [vmem:[#allocation10 + $0x3d0] sm:$0xff]
    %v632 = vld [vmem:[#allocation10 + $0x3d8] sm:$0xff]
    %v633 = vld [vmem:[#allocation10 + $0x3e0] sm:$0xff]
    %v634 = vld [vmem:[#allocation10 + $0x3e8] sm:$0xff]
    %v635 = vld [vmem:[#allocation10 + $0x3f0] sm:$0xff]
    %v636 = vld [vmem:[#allocation10 + $0x3f8] sm:$0xff]
    %v637 = vld [vmem:[#allocation10 + $0x400] sm:$0xff]
    %v638 = vld [vmem:[#allocation10 + $0x408] sm:$0xff]
    %v639 = vld [vmem:[#allocation10 + $0x410] sm:$0xff]
    %v640 = vld [vmem:[#allocation10 + $0x418] sm:$0xff]
    %v641 = vld [vmem:[#allocation10 + $0x420] sm:$0xff]
    %v642 = vld [vmem:[#allocation10 + $0x428] sm:$0xff]
    %v643 = vld [vmem:[#allocation10 + $0x430] sm:$0xff]
    %v644 = vld [vmem:[#allocation10 + $0x438] sm:$0xff]
    %v645 = vld [vmem:[#allocation10 + $0x440] sm:$0xff]
    %v646 = vld [vmem:[#allocation10 + $0x448] sm:$0xff]
    %v647 = vld [vmem:[#allocation10 + $0x450] sm:$0xff]
    %v648 = vld [vmem:[#allocation10 + $0x458] sm:$0xff]
    %v649 = vld [vmem:[#allocation10 + $0x460] sm:$0xff]
    %v650 = vld [vmem:[#allocation10 + $0x468] sm:$0xff]
    %v651 = vld [vmem:[#allocation10 + $0x470] sm:$0xff]
    %v652 = vld [vmem:[#allocation10 + $0x478] sm:$0xff]
    %653 = vmatprep.subr.mxu0 %v555
    %654 = vmatpush1.msra.mxu0 %v554
    %655 = vmatprep.subr.mxu0 %v552
    %656 = vmatpush1.msra.mxu0 %v551
    %657 = vmatprep.subr.mxu0 %v549
    %658 = vmatpush1.msra.mxu0 %v548
    %659 = vmatprep.subr.mxu0 %v546
    %660 = vmatpush1.msra.mxu0 %v545
    %661 = vmatprep.subr.mxu0 %v543
    %662 = vmatpush1.msra.mxu0 %v542
    %663 = vmatprep.subr.mxu0 %v540
    %664 = vmatpush1.msra.mxu0 %v539
    %665 = vmatprep.subr.mxu0 %v537
    %666 = vmatpush1.msra.mxu0 %v536
    %667 = vmatprep.subr.mxu0 %v534
    %668 = vmatpush1.msra.mxu0 %v533
    %669 = vmatprep.subr.mxu0 %v531
    %670 = vmatpush1.msra.mxu0 %v530
    %671 = vmatprep.subr.mxu0 %v528
    %672 = vmatpush1.msra.mxu0 %v527
    %673 = vmatprep.subr.mxu0 %v525
    %674 = vmatpush1.msra.mxu0 %v524
    %675 = vmatprep.subr.mxu0 %v522
    %676 = vmatpush1.msra.mxu0 %v521
    %677 = vmatprep.subr.mxu0 %v519
    %678 = vmatpush1.msra.mxu0 %v518
    %679 = vmatprep.subr.mxu0 %v516
    %680 = vmatpush1.msra.mxu0 %v515
    %681 = vmatprep.subr.mxu0 %v513
    %682 = vmatpush1.msra.mxu0 %v512
    %683 = vmatprep.subr.mxu0 %v510
    %684 = vmatpush1.msra.mxu0 %v509
    %685 = vmatprep.subr.mxu0 %v603
    %686 = vmatpush2.msra.mxu0 %v602
    %687 = vmatprep.subr.mxu0 %v600
    %688 = vmatpush2.msra.mxu0 %v599
    %689 = vmatprep.subr.mxu0 %v597
    %690 = vmatpush2.msra.mxu0 %v596
    %691 = vmatprep.subr.mxu0 %v594
    %692 = vmatpush2.msra.mxu0 %v593
    %693 = vmatprep.subr.mxu0 %v591
    %694 = vmatpush2.msra.mxu0 %v590
    %695 = vmatprep.subr.mxu0 %v588
    %696 = vmatpush2.msra.mxu0 %v587
    %697 = vmatprep.subr.mxu0 %v585
    %698 = vmatpush2.msra.mxu0 %v584
    %699 = vmatprep.subr.mxu0 %v582
    %700 = vmatpush2.msra.mxu0 %v581
    %701 = vmatprep.subr.mxu0 %v579
    %702 = vmatpush2.msra.mxu0 %v578
    %703 = vmatprep.subr.mxu0 %v576
    %704 = vmatpush2.msra.mxu0 %v575
    %705 = vmatprep.subr.mxu0 %v573
    %706 = vmatpush2.msra.mxu0 %v572
    %707 = vmatprep.subr.mxu0 %v570
    %708 = vmatpush2.msra.mxu0 %v569
    %709 = vmatprep.subr.mxu0 %v567
    %710 = vmatpush2.msra.mxu0 %v566
    %711 = vmatprep.subr.mxu0 %v564
    %712 = vmatpush2.msra.mxu0 %v563
    %713 = vmatprep.subr.mxu0 %v561
    %714 = vmatpush2.msra.mxu0 %v560
    %715 = vmatprep.subr.mxu0 %v558
    %716 = vmatpush2.msra.mxu0 %v557
    %717 = vmatprep.mubr.f32.mxu0 %v506
    %718 = vmatmul.mubr.f32.gmra.mxu0 %v504
    %v719 = vpop.f32.mrf.mxu0
    %v720 = vadd.f32 0.0, %v719
    %v721 = vpop.f32.mrf.mxu0
    %v722 = vadd.f32 0.0, %v721
    %723 = vdwg.mxu0
    %724 = vmatprep.subr.mxu0 %v651
    %725 = vmatpush1.msra.mxu0 %v650
    %726 = vmatprep.subr.mxu0 %v648
    %727 = vmatpush1.msra.mxu0 %v647
    %728 = vmatprep.subr.mxu0 %v645
    %729 = vmatpush1.msra.mxu0 %v644
    %730 = vmatprep.subr.mxu0 %v642
    %731 = vmatpush1.msra.mxu0 %v641
    %732 = vmatprep.subr.mxu0 %v639
    %733 = vmatpush1.msra.mxu0 %v638
    %734 = vmatprep.subr.mxu0 %v636
    %735 = vmatpush1.msra.mxu0 %v635
    %736 = vmatprep.subr.mxu0 %v633
    %737 = vmatpush1.msra.mxu0 %v632
    %738 = vmatprep.subr.mxu0 %v630
    %739 = vmatpush1.msra.mxu0 %v629
    %740 = vmatprep.subr.mxu0 %v627
    %741 = vmatpush1.msra.mxu0 %v626
    %742 = vmatprep.subr.mxu0 %v624
    %743 = vmatpush1.msra.mxu0 %v623
    %744 = vmatprep.subr.mxu0 %v621
    %745 = vmatpush1.msra.mxu0 %v620
    %746 = vmatprep.subr.mxu0 %v618
    %747 = vmatpush1.msra.mxu0 %v617
    %748 = vmatprep.subr.mxu0 %v615
    %749 = vmatpush1.msra.mxu0 %v614
    %750 = vmatprep.subr.mxu0 %v612
    %751 = vmatpush1.msra.mxu0 %v611
    %752 = vmatprep.subr.mxu0 %v609
    %753 = vmatpush1.msra.mxu0 %v608
    %754 = vmatprep.subr.mxu0 %v606
    %755 = vmatpush1.msra.mxu0 %v605
    %756 = vmatprep.subr.mxu0 0.0
    %757 = vmatpush2.msra.mxu0 0.0
    %758 = vmatprep.subr.mxu0 0.0
    %759 = vmatpush2.msra.mxu0 0.0
    %760 = vmatprep.subr.mxu0 0.0
    %761 = vmatpush2.msra.mxu0 0.0
    %762 = vmatprep.subr.mxu0 0.0
    %763 = vmatpush2.msra.mxu0 0.0
    %764 = vmatprep.subr.mxu0 0.0
    %765 = vmatpush2.msra.mxu0 0.0
    %766 = vmatprep.subr.mxu0 0.0
    %767 = vmatpush2.msra.mxu0 0.0
    %768 = vmatprep.subr.mxu0 0.0
    %769 = vmatpush2.msra.mxu0 0.0
    %770 = vmatprep.subr.mxu0 0.0
    %771 = vmatpush2.msra.mxu0 0.0
    %772 = vmatprep.subr.mxu0 0.0
    %773 = vmatpush2.msra.mxu0 0.0
    %774 = vmatprep.subr.mxu0 0.0
    %775 = vmatpush2.msra.mxu0 0.0
    %776 = vmatprep.subr.mxu0 0.0
    %777 = vmatpush2.msra.mxu0 0.0
    %778 = vmatprep.subr.mxu0 0.0
    %779 = vmatpush2.msra.mxu0 0.0
    %780 = vmatprep.subr.mxu0 0.0
    %781 = vmatpush2.msra.mxu0 0.0
    %782 = vmatprep.subr.mxu0 0.0
    %783 = vmatpush2.msra.mxu0 0.0
    %784 = vmatprep.subr.mxu0 0.0
    %785 = vmatpush2.msra.mxu0 0.0
    %786 = vmatprep.subr.mxu0 0.0
    %787 = vmatpush2.msra.mxu0 0.0
    %788 = vmatprep.mubr.f32.mxu0 0.0
    %789 = vmatmul.mubr.f32.gmra.mxu0 %v508
    %v790 = vpop.f32.mrf.mxu0
    %v791 = vadd.f32 %v720, %v790
    %v792 = vpop.f32.mrf.mxu0
    %v793 = vadd.f32 %v722, %v792
    %794 = vdwg.mxu0
    %795 = vmatprep.subr.mxu0 0.0
    %796 = vmatpush1.msra.mxu0 %v556
    %797 = vmatprep.subr.mxu0 0.0
    %798 = vmatpush1.msra.mxu0 %v553
    %799 = vmatprep.subr.mxu0 0.0
    %800 = vmatpush1.msra.mxu0 %v550
    %801 = vmatprep.subr.mxu0 0.0
    %802 = vmatpush1.msra.mxu0 %v547
    %803 = vmatprep.subr.mxu0 0.0
    %804 = vmatpush1.msra.mxu0 %v544
    %805 = vmatprep.subr.mxu0 0.0
    %806 = vmatpush1.msra.mxu0 %v541
    %807 = vmatprep.subr.mxu0 0.0
    %808 = vmatpush1.msra.mxu0 %v538
    %809 = vmatprep.subr.mxu0 0.0
    %810 = vmatpush1.msra.mxu0 %v535
    %811 = vmatprep.subr.mxu0 0.0
    %812 = vmatpush1.msra.mxu0 %v532
    %813 = vmatprep.subr.mxu0 0.0
    %814 = vmatpush1.msra.mxu0 %v529
    %815 = vmatprep.subr.mxu0 0.0
    %816 = vmatpush1.msra.mxu0 %v526
    %817 = vmatprep.subr.mxu0 0.0
    %818 = vmatpush1.msra.mxu0 %v523
    %819 = vmatprep.subr.mxu0 0.0
    %820 = vmatpush1.msra.mxu0 %v520
    %821 = vmatprep.subr.mxu0 0.0
    %822 = vmatpush1.msra.mxu0 %v517
    %823 = vmatprep.subr.mxu0 0.0
    %824 = vmatpush1.msra.mxu0 %v514
    %825 = vmatprep.subr.mxu0 0.0
    %826 = vmatpush1.msra.mxu0 %v511
    %827 = vmatprep.subr.mxu0 0.0
    %828 = vmatpush2.msra.mxu0 %v604
    %829 = vmatprep.subr.mxu0 0.0
    %830 = vmatpush2.msra.mxu0 %v601
    %831 = vmatprep.subr.mxu0 0.0
    %832 = vmatpush2.msra.mxu0 %v598
    %833 = vmatprep.subr.mxu0 0.0
    %834 = vmatpush2.msra.mxu0 %v595
    %835 = vmatprep.subr.mxu0 0.0
    %836 = vmatpush2.msra.mxu0 %v592
    %837 = vmatprep.subr.mxu0 0.0
    %838 = vmatpush2.msra.mxu0 %v589
    %839 = vmatprep.subr.mxu0 0.0
    %840 = vmatpush2.msra.mxu0 %v586
    %841 = vmatprep.subr.mxu0 0.0
    %842 = vmatpush2.msra.mxu0 %v583
    %843 = vmatprep.subr.mxu0 0.0
    %844 = vmatpush2.msra.mxu0 %v580
    %845 = vmatprep.subr.mxu0 0.0
    %846 = vmatpush2.msra.mxu0 %v577
    %847 = vmatprep.subr.mxu0 0.0
    %848 = vmatpush2.msra.mxu0 %v574
    %849 = vmatprep.subr.mxu0 0.0
    %850 = vmatpush2.msra.mxu0 %v571
    %851 = vmatprep.subr.mxu0 0.0
    %852 = vmatpush2.msra.mxu0 %v568
    %853 = vmatprep.subr.mxu0 0.0
    %854 = vmatpush2.msra.mxu0 %v565
    %855 = vmatprep.subr.mxu0 0.0
    %856 = vmatpush2.msra.mxu0 %v562
    %857 = vmatprep.subr.mxu0 0.0
    %858 = vmatpush2.msra.mxu0 %v559
    %859 = vmatprep.mubr.f32.mxu0 %v506
    %860 = vmatmul.mubr.f32.gmra.mxu0 %v504
    %v861 = vpop.f32.mrf.mxu0
    %v862 = vadd.f32 0.0, %v861
    %v863 = vpop.f32.mrf.mxu0
    %864 = vdwg.mxu0
    %865 = vmatprep.subr.mxu0 0.0
    %866 = vmatpush1.msra.mxu0 %v652
    %867 = vmatprep.subr.mxu0 0.0
    %868 = vmatpush1.msra.mxu0 %v649
    %869 = vmatprep.subr.mxu0 0.0
    %870 = vmatpush1.msra.mxu0 %v646
    %871 = vmatprep.subr.mxu0 0.0
    %872 = vmatpush1.msra.mxu0 %v643
    %873 = vmatprep.subr.mxu0 0.0
    %874 = vmatpush1.msra.mxu0 %v640
    %875 = vmatprep.subr.mxu0 0.0
    %876 = vmatpush1.msra.mxu0 %v637
    %877 = vmatprep.subr.mxu0 0.0
    %878 = vmatpush1.msra.mxu0 %v634
    %879 = vmatprep.subr.mxu0 0.0
    %880 = vmatpush1.msra.mxu0 %v631
    %881 = vmatprep.subr.mxu0 0.0
    %882 = vmatpush1.msra.mxu0 %v628
    %883 = vmatprep.subr.mxu0 0.0
    %884 = vmatpush1.msra.mxu0 %v625
    %885 = vmatprep.subr.mxu0 0.0
    %886 = vmatpush1.msra.mxu0 %v622
    %887 = vmatprep.subr.mxu0 0.0
    %888 = vmatpush1.msra.mxu0 %v619
    %889 = vmatprep.subr.mxu0 0.0
    %890 = vmatpush1.msra.mxu0 %v616
    %891 = vmatprep.subr.mxu0 0.0
    %892 = vmatpush1.msra.mxu0 %v613
    %893 = vmatprep.subr.mxu0 0.0
    %894 = vmatpush1.msra.mxu0 %v610
    %895 = vmatprep.subr.mxu0 0.0
    %896 = vmatpush1.msra.mxu0 %v607
    %897 = vmatprep.subr.mxu0 0.0
    %898 = vmatpush2.msra.mxu0 0.0
    %899 = vmatprep.subr.mxu0 0.0
    %900 = vmatpush2.msra.mxu0 0.0
    %901 = vmatprep.subr.mxu0 0.0
    %902 = vmatpush2.msra.mxu0 0.0
    %903 = vmatprep.subr.mxu0 0.0
    %904 = vmatpush2.msra.mxu0 0.0
    %905 = vmatprep.subr.mxu0 0.0
    %906 = vmatpush2.msra.mxu0 0.0
    %907 = vmatprep.subr.mxu0 0.0
    %908 = vmatpush2.msra.mxu0 0.0
    %909 = vmatprep.subr.mxu0 0.0
    %910 = vmatpush2.msra.mxu0 0.0
    %911 = vmatprep.subr.mxu0 0.0
    %912 = vmatpush2.msra.mxu0 0.0
    %913 = vmatprep.subr.mxu0 0.0
    %914 = vmatpush2.msra.mxu0 0.0
    %915 = vmatprep.subr.mxu0 0.0
    %916 = vmatpush2.msra.mxu0 0.0
    %917 = vmatprep.subr.mxu0 0.0
    %918 = vmatpush2.msra.mxu0 0.0
    %919 = vmatprep.subr.mxu0 0.0
    %920 = vmatpush2.msra.mxu0 0.0
    %921 = vmatprep.subr.mxu0 0.0
    %922 = vmatpush2.msra.mxu0 0.0
    %923 = vmatprep.subr.mxu0 0.0
    %924 = vmatpush2.msra.mxu0 0.0
    %925 = vmatprep.subr.mxu0 0.0
    %926 = vmatpush2.msra.mxu0 0.0
    %927 = vmatprep.subr.mxu0 0.0
    %928 = vmatpush2.msra.mxu0 0.0
    %929 = vmatprep.mubr.f32.mxu0 0.0
    %930 = vmatmul.mubr.f32.gmra.mxu0 %v508
    %v931 = vpop.f32.mrf.mxu0
    %v932 = vadd.f32 %v862, %v931
    %v933 = vpop.f32.mrf.mxu0
    %934 = vdwg.mxu0
    %935 = vst [vmem:[#allocation11] sm:$0xff] %v791
    %936 = vst [vmem:[#allocation11 + $0x8] sm:$0xff] %v793
    %937 = vst [vmem:[#allocation11 + $0x10] sm:$0xff] %v932
    // Predicated region
    $region54: #{tpu_custom_call.1} parent=1 // pred_check
      _
    $region55: #{tpu_custom_call.1} parent=1 // pred_check_branch
      %939 = sbr.rel (0) target = $region57
    $region56: #{tpu_custom_call.1} parent=1 // pred_region
      %s941 = ssub.s32 384, 384
      %942 = vsyncadd [#allocation4], %s941
      %s944 = sshll.u32 [#allocation11], 4
      %s945 = int_to_ptr.vmem [resolvable:$true] %s944
      %947 = dma.vmem_to_hbm [thread:$0]  %s945, 384, %s8, [#allocation4]
    $region57: #{tpu_custom_call.1} parent=1 // pred_fallthru
      _
    // Predicated region
    $region58: #{tpu_custom_call.1} parent=1 // pred_check
      _
    $region59: #{tpu_custom_call.1} parent=1 // pred_check_branch
      %949 = sbr.rel (0) target = $region61
    $region60: #{tpu_custom_call.1} parent=1 // pred_region
      %950 = dma.done [#allocation4], 384
    $region61: #{tpu_custom_call.1} parent=1 // pred_fallthru
      _
    %951 = vsyncpa [#allocation3], 1
    %952 = vsyncpa [#allocation6], 1
    %953 = vsyncpa [#allocation9], 1
    %954 = vsyncpa [#allocation4], 1

// kernel: tpu_custom_call.1
$region0: #{tpu_custom_call.1}
  #allocation0 [shape = 'u32[]', space=smem, size = 0x4, offset = 0x4, fixed_abs, tag = 'smem constant byte address 0x4 - core index']
  #allocation1 [shape = 'u32[144,128]{1,0:T(1,128)}', space=vmem, size = 0x12000, scoped, tag = 'internal scratch']
  %s0 = inlined_call_operand.hbm [shape: f32[8,128], index: 0, kind: input, shape index: {}]
  %s1 = inlined_call_operand.hbm [shape: f32[128,128], index: 1, kind: input, shape index: {}]
  %s2 = inlined_call_operand.vmem [shape: f32[1,128], index: 2, kind: input, shape index: {}]
  %s3 = inlined_call_operand.hbm [shape: f32[128,128], index: 3, kind: input, shape index: {}]
  %s4 = inlined_call_operand.vmem [shape: f32[1,128], index: 4, kind: input, shape index: {}]
  %s5 = inlined_call_operand.hbm [shape: f32[128,384], index: 5, kind: input, shape index: {}]
  %s6 = inlined_call_operand.vmem [shape: f32[1,384], index: 6, kind: input, shape index: {}]
  %s7 = inlined_call_operand.hbm [shape: f32[384,384], index: 7, kind: input, shape index: {}]
  %s8 = inlined_call_operand.hbm [shape: f32[8,384], index: 8, kind: output, shape index: {}]
  %s9 = sld [smem:[#allocation0]]
  $region62: #{tpu_custom_call.1} parent=0
    _
  %s11 = ssub.s32 1, %s9
  %s12 = scalar_select 0, %s11, %s9
  $region1: #{tpu_custom_call.1} parent=0
    #allocation2 [shape = 'u8[4096]{0}', space=vmem, size = 0x1000, scoped, tag = 'input window, operand 0, single buffered']
    #allocation3 [shape = 's32[1]{0}', space=sflag, size = 0x4, scoped, tag = 'scoped memory for tpu_custom_call.1']
    #allocation4 [shape = 's32[1]{0}', space=sflag, size = 0x4, scoped, tag = 'scoped memory for tpu_custom_call.1']
    #allocation5 [shape = 'u8[65536]{0}', space=vmem, size = 0x10000, scoped, tag = 'input window, operand 1, single buffered']
    #allocation6 [shape = 's32[1]{0}', space=sflag, size = 0x4, scoped, tag = 'scoped memory for tpu_custom_call.1']
    #allocation7 [shape = 'u8[65536]{0}', space=vmem, size = 0x10000, scoped, tag = 'input window, operand 3, single buffered']
    #allocation8 [shape = 'u8[196608]{0}', space=vmem, size = 0x30000, scoped, tag = 'input window, operand 5, single buffered']
    #allocation9 [shape = 's32[1]{0}', space=sflag, size = 0x4, scoped, tag = 'scoped memory for tpu_custom_call.1']
    #allocation10 [shape = 'u8[589824]{0}', space=vmem, size = 0x90000, scoped, tag = 'input window, operand 7, single buffered']
    #allocation11 [shape = 'u8[12288]{0}', space=vmem, size = 0x3000, scoped, tag = 'output window, operand 0, single buffered']
    %13 = vsyncpa [#allocation3], 0
    %14 = vsyncpa [#allocation6], 0
    %15 = vsyncpa [#allocation9], 0
    %16 = vsyncpa [#allocation4], 0
    // Predicated region
    $region2: #{tpu_custom_call.1} parent=1 // pred_check
      _
    $region3: #{tpu_custom_call.1} parent=1 // pred_check_branch
      %18 = sbr.rel (0) target = $region5
    $region4: #{tpu_custom_call.1} parent=1 // pred_region
      %s20 = ssub.s32 128, 128
      %21 = vsyncadd [#allocation3], %s20
      %s23 = sshll.u32 [#allocation2], 4
      %s24 = int_to_ptr.vmem [resolvable:$true] %s23
      %26 = dma.hbm_to_vmem [thread:$0]  %s0, 128, %s24, [#allocation3]
    $region5: #{tpu_custom_call.1} parent=1 // pred_fallthru
      _
    // Predicated region
    $region6: #{tpu_custom_call.1} parent=1 // pred_check
      _
    $region7: #{tpu_custom_call.1} parent=1 // pred_check_branch
      %28 = sbr.rel (0) target = $region9
    $region8: #{tpu_custom_call.1} parent=1 // pred_region
      %s30 = ssub.s32 2048, 2048
      %31 = vsyncadd [#allocation6], %s30
      %s32 = sshll.u32 [#allocation5], 4
      %s33 = int_to_ptr.vmem [resolvable:$true] %s32
      %38 = dma.hbm_to_vmem [thread:$0]  %s1, 2048, %s33, [#allocation6], 128, 128, 8
    $region9: #{tpu_custom_call.1} parent=1 // pred_fallthru
      _
    // Predicated region
    $region10: #{tpu_custom_call.1} parent=1 // pred_check
      _
    $region11: #{tpu_custom_call.1} parent=1 // pred_check_branch
      %40 = sbr.rel (0) target = $region13
    $region12: #{tpu_custom_call.1} parent=1 // pred_region
      _
    $region13: #{tpu_custom_call.1} parent=1 // pred_fallthru
      _
    // Predicated region
    $region14: #{tpu_custom_call.1} parent=1 // pred_check
      _
    $region15: #{tpu_custom_call.1} parent=1 // pred_check_branch
      %42 = sbr.rel (0) target = $region17
    $region16: #{tpu_custom_call.1} parent=1 // pred_region
      %s44 = ssub.s32 2048, 2048
      %45 = vsyncadd [#allocation6], %s44
      %s46 = sshll.u32 [#allocation7], 4
      %s47 = int_to_ptr.vmem [resolvable:$true] %s46
      %52 = dma.hbm_to_vmem [thread:$0]  %s3, 2048, %s47, [#allocation6], 128, 128, 8
    $region17: #{tpu_custom_call.1} parent=1 // pred_fallthru
      _
    // Predicated region
    $region18: #{tpu_custom_call.1} parent=1 // pred_check
      _
    $region19: #{tpu_custom_call.1} parent=1 // pred_check_branch
      %54 = sbr.rel (0) target = $region21
    $region20: #{tpu_custom_call.1} parent=1 // pred_region
      _
    $region21: #{tpu_custom_call.1} parent=1 // pred_fallthru
      _
    // Predicated region
    $region22: #{tpu_custom_call.1} parent=1 // pred_check
      _
    $region23: #{tpu_custom_call.1} parent=1 // pred_check_branch
      %56 = sbr.rel (0) target = $region25
    $region24: #{tpu_custom_call.1} parent=1 // pred_region
      %s58 = ssub.s32 6144, 6144
      %59 = vsyncadd [#allocation9], %s58
      %s60 = sshll.u32 [#allocation8], 4
      %s61 = int_to_ptr.vmem [resolvable:$true] %s60
      %66 = dma.hbm_to_vmem [thread:$0]  %s5, 6144, %s61, [#allocation9], 384, 384, 24
    $region25: #{tpu_custom_call.1} parent=1 // pred_fallthru
      _
    // Predicated region
    $region26: #{tpu_custom_call.1} parent=1 // pred_check
      _
    $region27: #{tpu_custom_call.1} parent=1 // pred_check_branch
      %68 = sbr.rel (0) target = $region29
    $region28: #{tpu_custom_call.1} parent=1 // pred_region
      _
    $region29: #{tpu_custom_call.1} parent=1 // pred_fallthru
      _
    // Predicated region
    $region30: #{tpu_custom_call.1} parent=1 // pred_check
      _
    $region31: #{tpu_custom_call.1} parent=1 // pred_check_branch
      %70 = sbr.rel (0) target = $region33
    $region32: #{tpu_custom_call.1} parent=1 // pred_region
      %s72 = ssub.s32 18432, 18432
      %73 = vsyncadd [#allocation9], %s72
      %s74 = sshll.u32 [#allocation10], 4
      %s75 = int_to_ptr.vmem [resolvable:$true] %s74
      %80 = dma.hbm_to_vmem [thread:$0]  %s7, 18432, %s75, [#allocation9], 384, 384, 24
    $region33: #{tpu_custom_call.1} parent=1 // pred_fallthru
      _
    // Predicated region
    $region34: #{tpu_custom_call.1} parent=1 // pred_check
      _
    $region35: #{tpu_custom_call.1} parent=1 // pred_check_branch
      %82 = sbr.rel (0) target = $region37
    $region36: #{tpu_custom_call.1} parent=1 // pred_region
      %83 = dma.done [#allocation3], 128
    $region37: #{tpu_custom_call.1} parent=1 // pred_fallthru
      _
    // Predicated region
    $region38: #{tpu_custom_call.1} parent=1 // pred_check
      _
    $region39: #{tpu_custom_call.1} parent=1 // pred_check_branch
      %85 = sbr.rel (0) target = $region41
    $region40: #{tpu_custom_call.1} parent=1 // pred_region
      %86 = dma.done [#allocation6], 2048
    $region41: #{tpu_custom_call.1} parent=1 // pred_fallthru
      _
    // Predicated region
    $region42: #{tpu_custom_call.1} parent=1 // pred_check
      _
    $region43: #{tpu_custom_call.1} parent=1 // pred_check_branch
      %88 = sbr.rel (0) target = $region45
    $region44: #{tpu_custom_call.1} parent=1 // pred_region
      %89 = dma.done [#allocation6], 2048
    $region45: #{tpu_custom_call.1} parent=1 // pred_fallthru
      _
    // Predicated region
    $region46: #{tpu_custom_call.1} parent=1 // pred_check
      _
    $region47: #{tpu_custom_call.1} parent=1 // pred_check_branch
      %91 = sbr.rel (0) target = $region49
    $region48: #{tpu_custom_call.1} parent=1 // pred_region
      %92 = dma.done [#allocation9], 6144
    $region49: #{tpu_custom_call.1} parent=1 // pred_fallthru
      _
    // Predicated region
    $region50: #{tpu_custom_call.1} parent=1 // pred_check
      _
    $region51: #{tpu_custom_call.1} parent=1 // pred_check_branch
      %94 = sbr.rel (0) target = $region53
    $region52: #{tpu_custom_call.1} parent=1 // pred_region
      %95 = dma.done [#allocation9], 18432
    $region53: #{tpu_custom_call.1} parent=1 // pred_fallthru
      _
    %v96 = vld [vmem:[#allocation2] sm:$0xff]
    %v97 = vld [vmem:[#allocation5] sm:$0xff]
    %v98 = vld [vmem:[#allocation5 + $0x8] sm:$0xff]
    %v99 = vld [vmem:[#allocation5 + $0x10] sm:$0xff]
    %v100 = vld [vmem:[#allocation5 + $0x18] sm:$0xff]
    %v101 = vld [vmem:[#allocation5 + $0x20] sm:$0xff]
    %v102 = vld [vmem:[#allocation5 + $0x28] sm:$0xff]
    %v103 = vld [vmem:[#allocation5 + $0x30] sm:$0xff]
    %v104 = vld [vmem:[#allocation5 + $0x38] sm:$0xff]
    %v105 = vld [vmem:[#allocation5 + $0x40] sm:$0xff]
    %v106 = vld [vmem:[#allocation5 + $0x48] sm:$0xff]
    %v107 = vld [vmem:[#allocation5 + $0x50] sm:$0xff]
    %v108 = vld [vmem:[#allocation5 + $0x58] sm:$0xff]
    %v109 = vld [vmem:[#allocation5 + $0x60] sm:$0xff]
    %v110 = vld [vmem:[#allocation5 + $0x68] sm:$0xff]
    %v111 = vld [vmem:[#allocation5 + $0x70] sm:$0xff]
    %v112 = vld [vmem:[#allocation5 + $0x78] sm:$0xff]
    %v113 = vld [vmem:[%s2] sm:$0x1]
    %v115 = vlaneseq
    %v116 = vshrl.u32 %v115, 7
    %v117 = vsub.s32 0, %v116
    %v118 = vrot.slane %v113, %v117
    %120 = vmatprep.subr.mxu0 0.0
    %121 = vmatpush1.msra.mxu0 %v112
    %122 = vmatprep.subr.mxu0 0.0
    %123 = vmatpush1.msra.mxu0 %v111
    %124 = vmatprep.subr.mxu0 0.0
    %125 = vmatpush1.msra.mxu0 %v110
    %126 = vmatprep.subr.mxu0 0.0
    %127 = vmatpush1.msra.mxu0 %v109
    %128 = vmatprep.subr.mxu0 0.0
    %129 = vmatpush1.msra.mxu0 %v108
    %130 = vmatprep.subr.mxu0 0.0
    %131 = vmatpush1.msra.mxu0 %v107
    %132 = vmatprep.subr.mxu0 0.0
    %133 = vmatpush1.msra.mxu0 %v106
    %134 = vmatprep.subr.mxu0 0.0
    %135 = vmatpush1.msra.mxu0 %v105
    %136 = vmatprep.subr.mxu0 0.0
    %137 = vmatpush1.msra.mxu0 %v104
    %138 = vmatprep.subr.mxu0 0.0
    %139 = vmatpush1.msra.mxu0 %v103
    %140 = vmatprep.subr.mxu0 0.0
    %141 = vmatpush1.msra.mxu0 %v102
    %142 = vmatprep.subr.mxu0 0.0
    %143 = vmatpush1.msra.mxu0 %v101
    %144 = vmatprep.subr.mxu0 0.0
    %145 = vmatpush1.msra.mxu0 %v100
    %146 = vmatprep.subr.mxu0 0.0
    %147 = vmatpush1.msra.mxu0 %v99
    %148 = vmatprep.subr.mxu0 0.0
    %149 = vmatpush1.msra.mxu0 %v98
    %150 = vmatprep.subr.mxu0 0.0
    %151 = vmatpush1.msra.mxu0 %v97
    %152 = vmatprep.subr.mxu0 0.0
    %153 = vmatpush2.msra.mxu0 0.0
    %154 = vmatprep.subr.mxu0 0.0
    %155 = vmatpush2.msra.mxu0 0.0
    %156 = vmatprep.subr.mxu0 0.0
    %157 = vmatpush2.msra.mxu0 0.0
    %158 = vmatprep.subr.mxu0 0.0
    %159 = vmatpush2.msra.mxu0 0.0
    %160 = vmatprep.subr.mxu0 0.0
    %161 = vmatpush2.msra.mxu0 0.0
    %162 = vmatprep.subr.mxu0 0.0
    %163 = vmatpush2.msra.mxu0 0.0
    %164 = vmatprep.subr.mxu0 0.0
    %165 = vmatpush2.msra.mxu0 0.0
    %166 = vmatprep.subr.mxu0 0.0
    %167 = vmatpush2.msra.mxu0 0.0
    %168 = vmatprep.subr.mxu0 0.0
    %169 = vmatpush2.msra.mxu0 0.0
    %170 = vmatprep.subr.mxu0 0.0
    %171 = vmatpush2.msra.mxu0 0.0
    %172 = vmatprep.subr.mxu0 0.0
    %173 = vmatpush2.msra.mxu0 0.0
    %174 = vmatprep.subr.mxu0 0.0
    %175 = vmatpush2.msra.mxu0 0.0
    %176 = vmatprep.subr.mxu0 0.0
    %177 = vmatpush2.msra.mxu0 0.0
    %178 = vmatprep.subr.mxu0 0.0
    %179 = vmatpush2.msra.mxu0 0.0
    %180 = vmatprep.subr.mxu0 0.0
    %181 = vmatpush2.msra.mxu0 0.0
    %182 = vmatprep.subr.mxu0 0.0
    %183 = vmatpush2.msra.mxu0 0.0
    %184 = vmatprep.mubr.f32.mxu0 0.0
    %185 = vmatmul.mubr.f32.gmra.mxu0 %v96
    %v186 = vpop.f32.mrf.mxu0
    %v187 = vadd.f32 %v118, %v186
    %v188 = vpop.f32.mrf.mxu0
    %189 = vdwg.mxu0
    %v190 = vmax.f32 %v187, 0.0
    %v191 = vld [vmem:[#allocation7] sm:$0xff]
    %v192 = vld [vmem:[#allocation7 + $0x8] sm:$0xff]
    %v193 = vld [vmem:[#allocation7 + $0x10] sm:$0xff]
    %v194 = vld [vmem:[#allocation7 + $0x18] sm:$0xff]
    %v195 = vld [vmem:[#allocation7 + $0x20] sm:$0xff]
    %v196 = vld [vmem:[#allocation7 + $0x28] sm:$0xff]
    %v197 = vld [vmem:[#allocation7 + $0x30] sm:$0xff]
    %v198 = vld [vmem:[#allocation7 + $0x38] sm:$0xff]
    %v199 = vld [vmem:[#allocation7 + $0x40] sm:$0xff]
    %v200 = vld [vmem:[#allocation7 + $0x48] sm:$0xff]
    %v201 = vld [vmem:[#allocation7 + $0x50] sm:$0xff]
    %v202 = vld [vmem:[#allocation7 + $0x58] sm:$0xff]
    %v203 = vld [vmem:[#allocation7 + $0x60] sm:$0xff]
    %v204 = vld [vmem:[#allocation7 + $0x68] sm:$0xff]
    %v205 = vld [vmem:[#allocation7 + $0x70] sm:$0xff]
    %v206 = vld [vmem:[#allocation7 + $0x78] sm:$0xff]
    %v207 = vld [vmem:[%s4] sm:$0x1]
    %v209 = vlaneseq
    %v210 = vshrl.u32 %v209, 7
    %v211 = vsub.s32 0, %v210
    %v212 = vrot.slane %v207, %v211
    %214 = vmatprep.subr.mxu0 0.0
    %215 = vmatpush1.msra.mxu0 %v206
    %216 = vmatprep.subr.mxu0 0.0
    %217 = vmatpush1.msra.mxu0 %v205
    %218 = vmatprep.subr.mxu0 0.0
    %219 = vmatpush1.msra.mxu0 %v204
    %220 = vmatprep.subr.mxu0 0.0
    %221 = vmatpush1.msra.mxu0 %v203
    %222 = vmatprep.subr.mxu0 0.0
    %223 = vmatpush1.msra.mxu0 %v202
    %224 = vmatprep.subr.mxu0 0.0
    %225 = vmatpush1.msra.mxu0 %v201
    %226 = vmatprep.subr.mxu0 0.0
    %227 = vmatpush1.msra.mxu0 %v200
    %228 = vmatprep.subr.mxu0 0.0
    %229 = vmatpush1.msra.mxu0 %v199
    %230 = vmatprep.subr.mxu0 0.0
    %231 = vmatpush1.msra.mxu0 %v198
    %232 = vmatprep.subr.mxu0 0.0
    %233 = vmatpush1.msra.mxu0 %v197
    %234 = vmatprep.subr.mxu0 0.0
    %235 = vmatpush1.msra.mxu0 %v196
    %236 = vmatprep.subr.mxu0 0.0
    %237 = vmatpush1.msra.mxu0 %v195
    %238 = vmatprep.subr.mxu0 0.0
    %239 = vmatpush1.msra.mxu0 %v194
    %240 = vmatprep.subr.mxu0 0.0
    %241 = vmatpush1.msra.mxu0 %v193
    %242 = vmatprep.subr.mxu0 0.0
    %243 = vmatpush1.msra.mxu0 %v192
    %244 = vmatprep.subr.mxu0 0.0
    %245 = vmatpush1.msra.mxu0 %v191
    %246 = vmatprep.subr.mxu0 0.0
    %247 = vmatpush2.msra.mxu0 0.0
    %248 = vmatprep.subr.mxu0 0.0
    %249 = vmatpush2.msra.mxu0 0.0
    %250 = vmatprep.subr.mxu0 0.0
    %251 = vmatpush2.msra.mxu0 0.0
    %252 = vmatprep.subr.mxu0 0.0
    %253 = vmatpush2.msra.mxu0 0.0
    %254 = vmatprep.subr.mxu0 0.0
    %255 = vmatpush2.msra.mxu0 0.0
    %256 = vmatprep.subr.mxu0 0.0
    %257 = vmatpush2.msra.mxu0 0.0
    %258 = vmatprep.subr.mxu0 0.0
    %259 = vmatpush2.msra.mxu0 0.0
    %260 = vmatprep.subr.mxu0 0.0
    %261 = vmatpush2.msra.mxu0 0.0
    %262 = vmatprep.subr.mxu0 0.0
    %263 = vmatpush2.msra.mxu0 0.0
    %264 = vmatprep.subr.mxu0 0.0
    %265 = vmatpush2.msra.mxu0 0.0
    %266 = vmatprep.subr.mxu0 0.0
    %267 = vmatpush2.msra.mxu0 0.0
    %268 = vmatprep.subr.mxu0 0.0
    %269 = vmatpush2.msra.mxu0 0.0
    %270 = vmatprep.subr.mxu0 0.0
    %271 = vmatpush2.msra.mxu0 0.0
    %272 = vmatprep.subr.mxu0 0.0
    %273 = vmatpush2.msra.mxu0 0.0
    %274 = vmatprep.subr.mxu0 0.0
    %275 = vmatpush2.msra.mxu0 0.0
    %276 = vmatprep.subr.mxu0 0.0
    %277 = vmatpush2.msra.mxu0 0.0
    %278 = vmatprep.mubr.f32.mxu0 0.0
    %279 = vmatmul.mubr.f32.gmra.mxu0 %v190
    %v280 = vpop.f32.mrf.mxu0
    %v281 = vadd.f32 %v212, %v280
    %v282 = vpop.f32.mrf.mxu0
    %283 = vdwg.mxu0
    %v284 = vmax.f32 %v281, 0.0
    %v285 = vld [vmem:[#allocation8] sm:$0xff]
    %v286 = vld [vmem:[#allocation8 + $0x8] sm:$0xff]
    %v287 = vld [vmem:[#allocation8 + $0x10] sm:$0xff]
    %v288 = vld [vmem:[#allocation8 + $0x18] sm:$0xff]
    %v289 = vld [vmem:[#allocation8 + $0x20] sm:$0xff]
    %v290 = vld [vmem:[#allocation8 + $0x28] sm:$0xff]
    %v291 = vld [vmem:[#allocation8 + $0x30] sm:$0xff]
    %v292 = vld [vmem:[#allocation8 + $0x38] sm:$0xff]
    %v293 = vld [vmem:[#allocation8 + $0x40] sm:$0xff]
    %v294 = vld [vmem:[#allocation8 + $0x48] sm:$0xff]
    %v295 = vld [vmem:[#allocation8 + $0x50] sm:$0xff]
    %v296 = vld [vmem:[#allocation8 + $0x58] sm:$0xff]
    %v297 = vld [vmem:[#allocation8 + $0x60] sm:$0xff]
    %v298 = vld [vmem:[#allocation8 + $0x68] sm:$0xff]
    %v299 = vld [vmem:[#allocation8 + $0x70] sm:$0xff]
    %v300 = vld [vmem:[#allocation8 + $0x78] sm:$0xff]
    %v301 = vld [vmem:[#allocation8 + $0x80] sm:$0xff]
    %v302 = vld [vmem:[#allocation8 + $0x88] sm:$0xff]
    %v303 = vld [vmem:[#allocation8 + $0x90] sm:$0xff]
    %v304 = vld [vmem:[#allocation8 + $0x98] sm:$0xff]
    %v305 = vld [vmem:[#allocation8 + $0xa0] sm:$0xff]
    %v306 = vld [vmem:[#allocation8 + $0xa8] sm:$0xff]
    %v307 = vld [vmem:[#allocation8 + $0xb0] sm:$0xff]
    %v308 = vld [vmem:[#allocation8 + $0xb8] sm:$0xff]
    %v309 = vld [vmem:[#allocation8 + $0xc0] sm:$0xff]
    %v310 = vld [vmem:[#allocation8 + $0xc8] sm:$0xff]
    %v311 = vld [vmem:[#allocation8 + $0xd0] sm:$0xff]
    %v312 = vld [vmem:[#allocation8 + $0xd8] sm:$0xff]
    %v313 = vld [vmem:[#allocation8 + $0xe0] sm:$0xff]
    %v314 = vld [vmem:[#allocation8 + $0xe8] sm:$0xff]
    %v315 = vld [vmem:[#allocation8 + $0xf0] sm:$0xff]
    %v316 = vld [vmem:[#allocation8 + $0xf8] sm:$0xff]
    %v317 = vld [vmem:[#allocation8 + $0x100] sm:$0xff]
    %v318 = vld [vmem:[#allocation8 + $0x108] sm:$0xff]
    %v319 = vld [vmem:[#allocation8 + $0x110] sm:$0xff]
    %v320 = vld [vmem:[#allocation8 + $0x118] sm:$0xff]
    %v321 = vld [vmem:[#allocation8 + $0x120] sm:$0xff]
    %v322 = vld [vmem:[#allocation8 + $0x128] sm:$0xff]
    %v323 = vld [vmem:[#allocation8 + $0x130] sm:$0xff]
    %v324 = vld [vmem:[#allocation8 + $0x138] sm:$0xff]
    %v325 = vld [vmem:[#allocation8 + $0x140] sm:$0xff]
    %v326 = vld [vmem:[#allocation8 + $0x148] sm:$0xff]
    %v327 = vld [vmem:[#allocation8 + $0x150] sm:$0xff]
    %v328 = vld [vmem:[#allocation8 + $0x158] sm:$0xff]
    %v329 = vld [vmem:[#allocation8 + $0x160] sm:$0xff]
    %v330 = vld [vmem:[#allocation8 + $0x168] sm:$0xff]
    %v331 = vld [vmem:[#allocation8 + $0x170] sm:$0xff]
    %v332 = vld [vmem:[#allocation8 + $0x178] sm:$0xff]
    %v333 = vld [vmem:[%s6] sm:$0x7]
    %v335 = vlaneseq
    %v336 = vshrl.u32 %v335, 7
    %v337 = vsub.s32 0, %v336
    %v338 = vrot.slane %v333, %v337
    %v339 = vlaneseq
    %v340 = vshrl.u32 %v339, 7
    %v341 = vsub.s32 1, %v340
    %v342 = vrot.slane %v333, %v341
    %v343 = vlaneseq
    %v344 = vshrl.u32 %v343, 7
    %v345 = vsub.s32 2, %v344
    %v346 = vrot.slane %v333, %v345
    %350 = vmatprep.subr.mxu0 %v331
    %351 = vmatpush1.msra.mxu0 %v330
    %352 = vmatprep.subr.mxu0 %v328
    %353 = vmatpush1.msra.mxu0 %v327
    %354 = vmatprep.subr.mxu0 %v325
    %355 = vmatpush1.msra.mxu0 %v324
    %356 = vmatprep.subr.mxu0 %v322
    %357 = vmatpush1.msra.mxu0 %v321
    %358 = vmatprep.subr.mxu0 %v319
    %359 = vmatpush1.msra.mxu0 %v318
    %360 = vmatprep.subr.mxu0 %v316
    %361 = vmatpush1.msra.mxu0 %v315
    %362 = vmatprep.subr.mxu0 %v313
    %363 = vmatpush1.msra.mxu0 %v312
    %364 = vmatprep.subr.mxu0 %v310
    %365 = vmatpush1.msra.mxu0 %v309
    %366 = vmatprep.subr.mxu0 %v307
    %367 = vmatpush1.msra.mxu0 %v306
    %368 = vmatprep.subr.mxu0 %v304
    %369 = vmatpush1.msra.mxu0 %v303
    %370 = vmatprep.subr.mxu0 %v301
    %371 = vmatpush1.msra.mxu0 %v300
    %372 = vmatprep.subr.mxu0 %v298
    %373 = vmatpush1.msra.mxu0 %v297
    %374 = vmatprep.subr.mxu0 %v295
    %375 = vmatpush1.msra.mxu0 %v294
    %376 = vmatprep.subr.mxu0 %v292
    %377 = vmatpush1.msra.mxu0 %v291
    %378 = vmatprep.subr.mxu0 %v289
    %379 = vmatpush1.msra.mxu0 %v288
    %380 = vmatprep.subr.mxu0 %v286
    %381 = vmatpush1.msra.mxu0 %v285
    %382 = vmatprep.subr.mxu0 0.0
    %383 = vmatpush2.msra.mxu0 0.0
    %384 = vmatprep.subr.mxu0 0.0
    %385 = vmatpush2.msra.mxu0 0.0
    %386 = vmatprep.subr.mxu0 0.0
    %387 = vmatpush2.msra.mxu0 0.0
    %388 = vmatprep.subr.mxu0 0.0
    %389 = vmatpush2.msra.mxu0 0.0
    %390 = vmatprep.subr.mxu0 0.0
    %391 = vmatpush2.msra.mxu0 0.0
    %392 = vmatprep.subr.mxu0 0.0
    %393 = vmatpush2.msra.mxu0 0.0
    %394 = vmatprep.subr.mxu0 0.0
    %395 = vmatpush2.msra.mxu0 0.0
    %396 = vmatprep.subr.mxu0 0.0
    %397 = vmatpush2.msra.mxu0 0.0
    %398 = vmatprep.subr.mxu0 0.0
    %399 = vmatpush2.msra.mxu0 0.0
    %400 = vmatprep.subr.mxu0 0.0
    %401 = vmatpush2.msra.mxu0 0.0
    %402 = vmatprep.subr.mxu0 0.0
    %403 = vmatpush2.msra.mxu0 0.0
    %404 = vmatprep.subr.mxu0 0.0
    %405 = vmatpush2.msra.mxu0 0.0
    %406 = vmatprep.subr.mxu0 0.0
    %407 = vmatpush2.msra.mxu0 0.0
    %408 = vmatprep.subr.mxu0 0.0
    %409 = vmatpush2.msra.mxu0 0.0
    %410 = vmatprep.subr.mxu0 0.0
    %411 = vmatpush2.msra.mxu0 0.0
    %412 = vmatprep.subr.mxu0 0.0
    %413 = vmatpush2.msra.mxu0 0.0
    %414 = vmatprep.mubr.f32.mxu0 0.0
    %415 = vmatmul.mubr.f32.gmra.mxu0 %v284
    %v416 = vpop.f32.mrf.mxu0
    %v417 = vadd.f32 %v338, %v416
    %v418 = vpop.f32.mrf.mxu0
    %v419 = vadd.f32 %v342, %v418
    %420 = vdwg.mxu0
    %421 = vmatprep.subr.mxu0 0.0
    %422 = vmatpush1.msra.mxu0 %v332
    %423 = vmatprep.subr.mxu0 0.0
    %424 = vmatpush1.msra.mxu0 %v329
    %425 = vmatprep.subr.mxu0 0.0
    %426 = vmatpush1.msra.mxu0 %v326
    %427 = vmatprep.subr.mxu0 0.0
    %428 = vmatpush1.msra.mxu0 %v323
    %429 = vmatprep.subr.mxu0 0.0
    %430 = vmatpush1.msra.mxu0 %v320
    %431 = vmatprep.subr.mxu0 0.0
    %432 = vmatpush1.msra.mxu0 %v317
    %433 = vmatprep.subr.mxu0 0.0
    %434 = vmatpush1.msra.mxu0 %v314
    %435 = vmatprep.subr.mxu0 0.0
    %436 = vmatpush1.msra.mxu0 %v311
    %437 = vmatprep.subr.mxu0 0.0
    %438 = vmatpush1.msra.mxu0 %v308
    %439 = vmatprep.subr.mxu0 0.0
    %440 = vmatpush1.msra.mxu0 %v305
    %441 = vmatprep.subr.mxu0 0.0
    %442 = vmatpush1.msra.mxu0 %v302
    %443 = vmatprep.subr.mxu0 0.0
    %444 = vmatpush1.msra.mxu0 %v299
    %445 = vmatprep.subr.mxu0 0.0
    %446 = vmatpush1.msra.mxu0 %v296
    %447 = vmatprep.subr.mxu0 0.0
    %448 = vmatpush1.msra.mxu0 %v293
    %449 = vmatprep.subr.mxu0 0.0
    %450 = vmatpush1.msra.mxu0 %v290
    %451 = vmatprep.subr.mxu0 0.0
    %452 = vmatpush1.msra.mxu0 %v287
    %453 = vmatprep.subr.mxu0 0.0
    %454 = vmatpush2.msra.mxu0 0.0
    %455 = vmatprep.subr.mxu0 0.0
    %456 = vmatpush2.msra.mxu0 0.0
    %457 = vmatprep.subr.mxu0 0.0
    %458 = vmatpush2.msra.mxu0 0.0
    %459 = vmatprep.subr.mxu0 0.0
    %460 = vmatpush2.msra.mxu0 0.0
    %461 = vmatprep.subr.mxu0 0.0
    %462 = vmatpush2.msra.mxu0 0.0
    %463 = vmatprep.subr.mxu0 0.0
    %464 = vmatpush2.msra.mxu0 0.0
    %465 = vmatprep.subr.mxu0 0.0
    %466 = vmatpush2.msra.mxu0 0.0
    %467 = vmatprep.subr.mxu0 0.0
    %468 = vmatpush2.msra.mxu0 0.0
    %469 = vmatprep.subr.mxu0 0.0
    %470 = vmatpush2.msra.mxu0 0.0
    %471 = vmatprep.subr.mxu0 0.0
    %472 = vmatpush2.msra.mxu0 0.0
    %473 = vmatprep.subr.mxu0 0.0
    %474 = vmatpush2.msra.mxu0 0.0
    %475 = vmatprep.subr.mxu0 0.0
    %476 = vmatpush2.msra.mxu0 0.0
    %477 = vmatprep.subr.mxu0 0.0
    %478 = vmatpush2.msra.mxu0 0.0
    %479 = vmatprep.subr.mxu0 0.0
    %480 = vmatpush2.msra.mxu0 0.0
    %481 = vmatprep.subr.mxu0 0.0
    %482 = vmatpush2.msra.mxu0 0.0
    %483 = vmatprep.subr.mxu0 0.0
    %484 = vmatpush2.msra.mxu0 0.0
    %485 = vmatprep.mubr.f32.mxu0 0.0
    %486 = vmatmul.mubr.f32.gmra.mxu0 %v284
    %v487 = vpop.f32.mrf.mxu0
    %v488 = vadd.f32 %v346, %v487
    %v489 = vpop.f32.mrf.mxu0
    %490 = vdwg.mxu0
    %v491 = vxor.u32 %v417, 2147483648
    %v492 = vxor.u32 %v419, 2147483648
    %v493 = vxor.u32 %v488, 2147483648
    %v494 = vmul.f32 %v491, 1.442695
    %v495 = vpow.pop %v494
    %v496 = vmul.f32 %v492, 1.442695
    %v497 = vpow.pop %v496
    %v498 = vmul.f32 %v493, 1.442695
    %v499 = vpow.pop %v498
    %v500 = vadd.f32 %v495, 1.0
    %v501 = vadd.f32 %v497, 1.0
    %v502 = vadd.f32 %v499, 1.0
    %v503 = vrcp.pop %v500
    %v504 = vmul.f32 1.0, %v503
    %v505 = vrcp.pop %v501
    %v506 = vmul.f32 1.0, %v505
    %v507 = vrcp.pop %v502
    %v508 = vmul.f32 1.0, %v507
    %v509 = vld [vmem:[#allocation10] sm:$0xff]
    %v510 = vld [vmem:[#allocation10 + $0x8] sm:$0xff]
    %v511 = vld [vmem:[#allocation10 + $0x10] sm:$0xff]
    %v512 = vld [vmem:[#allocation10 + $0x18] sm:$0xff]
    %v513 = vld [vmem:[#allocation10 + $0x20] sm:$0xff]
    %v514 = vld [vmem:[#allocation10 + $0x28] sm:$0xff]
    %v515 = vld [vmem:[#allocation10 + $0x30] sm:$0xff]
    %v516 = vld [vmem:[#allocation10 + $0x38] sm:$0xff]
    %v517 = vld [vmem:[#allocation10 + $0x40] sm:$0xff]
    %v518 = vld [vmem:[#allocation10 + $0x48] sm:$0xff]
    %v519 = vld [vmem:[#allocation10 + $0x50] sm:$0xff]
    %v520 = vld [vmem:[#allocation10 + $0x58] sm:$0xff]
    %v521 = vld [vmem:[#allocation10 + $0x60] sm:$0xff]
    %v522 = vld [vmem:[#allocation10 + $0x68] sm:$0xff]
    %v523 = vld [vmem:[#allocation10 + $0x70] sm:$0xff]
    %v524 = vld [vmem:[#allocation10 + $0x78] sm:$0xff]
    %v525 = vld [vmem:[#allocation10 + $0x80] sm:$0xff]
    %v526 = vld [vmem:[#allocation10 + $0x88] sm:$0xff]
    %v527 = vld [vmem:[#allocation10 + $0x90] sm:$0xff]
    %v528 = vld [vmem:[#allocation10 + $0x98] sm:$0xff]
    %v529 = vld [vmem:[#allocation10 + $0xa0] sm:$0xff]
    %v530 = vld [vmem:[#allocation10 + $0xa8] sm:$0xff]
    %v531 = vld [vmem:[#allocation10 + $0xb0] sm:$0xff]
    %v532 = vld [vmem:[#allocation10 + $0xb8] sm:$0xff]
    %v533 = vld [vmem:[#allocation10 + $0xc0] sm:$0xff]
    %v534 = vld [vmem:[#allocation10 + $0xc8] sm:$0xff]
    %v535 = vld [vmem:[#allocation10 + $0xd0] sm:$0xff]
    %v536 = vld [vmem:[#allocation10 + $0xd8] sm:$0xff]
    %v537 = vld [vmem:[#allocation10 + $0xe0] sm:$0xff]
    %v538 = vld [vmem:[#allocation10 + $0xe8] sm:$0xff]
    %v539 = vld [vmem:[#allocation10 + $0xf0] sm:$0xff]
    %v540 = vld [vmem:[#allocation10 + $0xf8] sm:$0xff]
    %v541 = vld [vmem:[#allocation10 + $0x100] sm:$0xff]
    %v542 = vld [vmem:[#allocation10 + $0x108] sm:$0xff]
    %v543 = vld [vmem:[#allocation10 + $0x110] sm:$0xff]
    %v544 = vld [vmem:[#allocation10 + $0x118] sm:$0xff]
    %v545 = vld [vmem:[#allocation10 + $0x120] sm:$0xff]
    %v546 = vld [vmem:[#allocation10 + $0x128] sm:$0xff]
    %v547 = vld [vmem:[#allocation10 + $0x130] sm:$0xff]
    %v548 = vld [vmem:[#allocation10 + $0x138] sm:$0xff]
    %v549 = vld [vmem:[#allocation10 + $0x140] sm:$0xff]
    %v550 = vld [vmem:[#allocation10 + $0x148] sm:$0xff]
    %v551 = vld [vmem:[#allocation10 + $0x150] sm:$0xff]
    %v552 = vld [vmem:[#allocation10 + $0x158] sm:$0xff]
    %v553 = vld [vmem:[#allocation10 + $0x160] sm:$0xff]
    %v554 = vld [vmem:[#allocation10 + $0x168] sm:$0xff]
    %v555 = vld [vmem:[#allocation10 + $0x170] sm:$0xff]
    %v556 = vld [vmem:[#allocation10 + $0x178] sm:$0xff]
    %v557 = vld [vmem:[#allocation10 + $0x180] sm:$0xff]
    %v558 = vld [vmem:[#allocation10 + $0x188] sm:$0xff]
    %v559 = vld [vmem:[#allocation10 + $0x190] sm:$0xff]
    %v560 = vld [vmem:[#allocation10 + $0x198] sm:$0xff]
    %v561 = vld [vmem:[#allocation10 + $0x1a0] sm:$0xff]
    %v562 = vld [vmem:[#allocation10 + $0x1a8] sm:$0xff]
    %v563 = vld [vmem:[#allocation10 + $0x1b0] sm:$0xff]
    %v564 = vld [vmem:[#allocation10 + $0x1b8] sm:$0xff]
    %v565 = vld [vmem:[#allocation10 + $0x1c0] sm:$0xff]
    %v566 = vld [vmem:[#allocation10 + $0x1c8] sm:$0xff]
    %v567 = vld [vmem:[#allocation10 + $0x1d0] sm:$0xff]
    %v568 = vld [vmem:[#allocation10 + $0x1d8] sm:$0xff]
    %v569 = vld [vmem:[#allocation10 + $0x1e0] sm:$0xff]
    %v570 = vld [vmem:[#allocation10 + $0x1e8] sm:$0xff]
    %v571 = vld [vmem:[#allocation10 + $0x1f0] sm:$0xff]
    %v572 = vld [vmem:[#allocation10 + $0x1f8] sm:$0xff]
    %v573 = vld [vmem:[#allocation10 + $0x200] sm:$0xff]
    %v574 = vld [vmem:[#allocation10 + $0x208] sm:$0xff]
    %v575 = vld [vmem:[#allocation10 + $0x210] sm:$0xff]
    %v576 = vld [vmem:[#allocation10 + $0x218] sm:$0xff]
    %v577 = vld [vmem:[#allocation10 + $0x220] sm:$0xff]
    %v578 = vld [vmem:[#allocation10 + $0x228] sm:$0xff]
    %v579 = vld [vmem:[#allocation10 + $0x230] sm:$0xff]
    %v580 = vld [vmem:[#allocation10 + $0x238] sm:$0xff]
    %v581 = vld [vmem:[#allocation10 + $0x240] sm:$0xff]
    %v582 = vld [vmem:[#allocation10 + $0x248] sm:$0xff]
    %v583 = vld [vmem:[#allocation10 + $0x250] sm:$0xff]
    %v584 = vld [vmem:[#allocation10 + $0x258] sm:$0xff]
    %v585 = vld [vmem:[#allocation10 + $0x260] sm:$0xff]
    %v586 = vld [vmem:[#allocation10 + $0x268] sm:$0xff]
    %v587 = vld [vmem:[#allocation10 + $0x270] sm:$0xff]
    %v588 = vld [vmem:[#allocation10 + $0x278] sm:$0xff]
    %v589 = vld [vmem:[#allocation10 + $0x280] sm:$0xff]
    %v590 = vld [vmem:[#allocation10 + $0x288] sm:$0xff]
    %v591 = vld [vmem:[#allocation10 + $0x290] sm:$0xff]
    %v592 = vld [vmem:[#allocation10 + $0x298] sm:$0xff]
    %v593 = vld [vmem:[#allocation10 + $0x2a0] sm:$0xff]
    %v594 = vld [vmem:[#allocation10 + $0x2a8] sm:$0xff]
    %v595 = vld [vmem:[#allocation10 + $0x2b0] sm:$0xff]
    %v596 = vld [vmem:[#allocation10 + $0x2b8] sm:$0xff]
    %v597 = vld [vmem:[#allocation10 + $0x2c0] sm:$0xff]
    %v598 = vld [vmem:[#allocation10 + $0x2c8] sm:$0xff]
    %v599 = vld [vmem:[#allocation10 + $0x2d0] sm:$0xff]
    %v600 = vld [vmem:[#allocation10 + $0x2d8] sm:$0xff]
    %v601 = vld [vmem:[#allocation10 + $0x2e0] sm:$0xff]
    %v602 = vld [vmem:[#allocation10 + $0x2e8] sm:$0xff]
    %v603 = vld [vmem:[#allocation10 + $0x2f0] sm:$0xff]
    %v604 = vld [vmem:[#allocation10 + $0x2f8] sm:$0xff]
    %v605 = vld [vmem:[#allocation10 + $0x300] sm:$0xff]
    %v606 = vld [vmem:[#allocation10 + $0x308] sm:$0xff]
    %v607 = vld [vmem:[#allocation10 + $0x310] sm:$0xff]
    %v608 = vld [vmem:[#allocation10 + $0x318] sm:$0xff]
    %v609 = vld [vmem:[#allocation10 + $0x320] sm:$0xff]
    %v610 = vld [vmem:[#allocation10 + $0x328] sm:$0xff]
    %v611 = vld [vmem:[#allocation10 + $0x330] sm:$0xff]
    %v612 = vld [vmem:[#allocation10 + $0x338] sm:$0xff]
    %v613 = vld [vmem:[#allocation10 + $0x340] sm:$0xff]
    %v614 = vld [vmem:[#allocation10 + $0x348] sm:$0xff]
    %v615 = vld [vmem:[#allocation10 + $0x350] sm:$0xff]
    %v616 = vld [vmem:[#allocation10 + $0x358] sm:$0xff]
    %v617 = vld [vmem:[#allocation10 + $0x360] sm:$0xff]
    %v618 = vld [vmem:[#allocation10 + $0x368] sm:$0xff]
    %v619 = vld [vmem:[#allocation10 + $0x370] sm:$0xff]
    %v620 = vld [vmem:[#allocation10 + $0x378] sm:$0xff]
    %v621 = vld [vmem:[#allocation10 + $0x380] sm:$0xff]
    %v622 = vld [vmem:[#allocation10 + $0x388] sm:$0xff]
    %v623 = vld [vmem:[#allocation10 + $0x390] sm:$0xff]
    %v624 = vld [vmem:[#allocation10 + $0x398] sm:$0xff]
    %v625 = vld [vmem:[#allocation10 + $0x3a0] sm:$0xff]
    %v626 = vld [vmem:[#allocation10 + $0x3a8] sm:$0xff]
    %v627 = vld [vmem:[#allocation10 + $0x3b0] sm:$0xff]
    %v628 = vld [vmem:[#allocation10 + $0x3b8] sm:$0xff]
    %v629 = vld [vmem:[#allocation10 + $0x3c0] sm:$0xff]
    %v630 = vld [vmem:[#allocation10 + $0x3c8] sm:$0xff]
    %v631 = vld [vmem:[#allocation10 + $0x3d0] sm:$0xff]
    %v632 = vld [vmem:[#allocation10 + $0x3d8] sm:$0xff]
    %v633 = vld [vmem:[#allocation10 + $0x3e0] sm:$0xff]
    %v634 = vld [vmem:[#allocation10 + $0x3e8] sm:$0xff]
    %v635 = vld [vmem:[#allocation10 + $0x3f0] sm:$0xff]
    %v636 = vld [vmem:[#allocation10 + $0x3f8] sm:$0xff]
    %v637 = vld [vmem:[#allocation10 + $0x400] sm:$0xff]
    %v638 = vld [vmem:[#allocation10 + $0x408] sm:$0xff]
    %v639 = vld [vmem:[#allocation10 + $0x410] sm:$0xff]
    %v640 = vld [vmem:[#allocation10 + $0x418] sm:$0xff]
    %v641 = vld [vmem:[#allocation10 + $0x420] sm:$0xff]
    %v642 = vld [vmem:[#allocation10 + $0x428] sm:$0xff]
    %v643 = vld [vmem:[#allocation10 + $0x430] sm:$0xff]
    %v644 = vld [vmem:[#allocation10 + $0x438] sm:$0xff]
    %v645 = vld [vmem:[#allocation10 + $0x440] sm:$0xff]
    %v646 = vld [vmem:[#allocation10 + $0x448] sm:$0xff]
    %v647 = vld [vmem:[#allocation10 + $0x450] sm:$0xff]
    %v648 = vld [vmem:[#allocation10 + $0x458] sm:$0xff]
    %v649 = vld [vmem:[#allocation10 + $0x460] sm:$0xff]
    %v650 = vld [vmem:[#allocation10 + $0x468] sm:$0xff]
    %v651 = vld [vmem:[#allocation10 + $0x470] sm:$0xff]
    %v652 = vld [vmem:[#allocation10 + $0x478] sm:$0xff]
    %653 = vmatprep.subr.mxu0 %v555
    %654 = vmatpush1.msra.mxu0 %v554
    %655 = vmatprep.subr.mxu0 %v552
    %656 = vmatpush1.msra.mxu0 %v551
    %657 = vmatprep.subr.mxu0 %v549
    %658 = vmatpush1.msra.mxu0 %v548
    %659 = vmatprep.subr.mxu0 %v546
    %660 = vmatpush1.msra.mxu0 %v545
    %661 = vmatprep.subr.mxu0 %v543
    %662 = vmatpush1.msra.mxu0 %v542
    %663 = vmatprep.subr.mxu0 %v540
    %664 = vmatpush1.msra.mxu0 %v539
    %665 = vmatprep.subr.mxu0 %v537
    %666 = vmatpush1.msra.mxu0 %v536
    %667 = vmatprep.subr.mxu0 %v534
    %668 = vmatpush1.msra.mxu0 %v533
    %669 = vmatprep.subr.mxu0 %v531
    %670 = vmatpush1.msra.mxu0 %v530
    %671 = vmatprep.subr.mxu0 %v528
    %672 = vmatpush1.msra.mxu0 %v527
    %673 = vmatprep.subr.mxu0 %v525
    %674 = vmatpush1.msra.mxu0 %v524
    %675 = vmatprep.subr.mxu0 %v522
    %676 = vmatpush1.msra.mxu0 %v521
    %677 = vmatprep.subr.mxu0 %v519
    %678 = vmatpush1.msra.mxu0 %v518
    %679 = vmatprep.subr.mxu0 %v516
    %680 = vmatpush1.msra.mxu0 %v515
    %681 = vmatprep.subr.mxu0 %v513
    %682 = vmatpush1.msra.mxu0 %v512
    %683 = vmatprep.subr.mxu0 %v510
    %684 = vmatpush1.msra.mxu0 %v509
    %685 = vmatprep.subr.mxu0 %v603
    %686 = vmatpush2.msra.mxu0 %v602
    %687 = vmatprep.subr.mxu0 %v600
    %688 = vmatpush2.msra.mxu0 %v599
    %689 = vmatprep.subr.mxu0 %v597
    %690 = vmatpush2.msra.mxu0 %v596
    %691 = vmatprep.subr.mxu0 %v594
    %692 = vmatpush2.msra.mxu0 %v593
    %693 = vmatprep.subr.mxu0 %v591
    %694 = vmatpush2.msra.mxu0 %v590
    %695 = vmatprep.subr.mxu0 %v588
    %696 = vmatpush2.msra.mxu0 %v587
    %697 = vmatprep.subr.mxu0 %v585
    %698 = vmatpush2.msra.mxu0 %v584
    %699 = vmatprep.subr.mxu0 %v582
    %700 = vmatpush2.msra.mxu0 %v581
    %701 = vmatprep.subr.mxu0 %v579
    %702 = vmatpush2.msra.mxu0 %v578
    %703 = vmatprep.subr.mxu0 %v576
    %704 = vmatpush2.msra.mxu0 %v575
    %705 = vmatprep.subr.mxu0 %v573
    %706 = vmatpush2.msra.mxu0 %v572
    %707 = vmatprep.subr.mxu0 %v570
    %708 = vmatpush2.msra.mxu0 %v569
    %709 = vmatprep.subr.mxu0 %v567
    %710 = vmatpush2.msra.mxu0 %v566
    %711 = vmatprep.subr.mxu0 %v564
    %712 = vmatpush2.msra.mxu0 %v563
    %713 = vmatprep.subr.mxu0 %v561
    %714 = vmatpush2.msra.mxu0 %v560
    %715 = vmatprep.subr.mxu0 %v558
    %716 = vmatpush2.msra.mxu0 %v557
    %717 = vmatprep.mubr.f32.mxu0 %v506
    %718 = vmatmul.mubr.f32.gmra.mxu0 %v504
    %v719 = vpop.f32.mrf.mxu0
    %v720 = vadd.f32 0.0, %v719
    %v721 = vpop.f32.mrf.mxu0
    %v722 = vadd.f32 0.0, %v721
    %723 = vdwg.mxu0
    %724 = vmatprep.subr.mxu0 %v651
    %725 = vmatpush1.msra.mxu0 %v650
    %726 = vmatprep.subr.mxu0 %v648
    %727 = vmatpush1.msra.mxu0 %v647
    %728 = vmatprep.subr.mxu0 %v645
    %729 = vmatpush1.msra.mxu0 %v644
    %730 = vmatprep.subr.mxu0 %v642
    %731 = vmatpush1.msra.mxu0 %v641
    %732 = vmatprep.subr.mxu0 %v639
    %733 = vmatpush1.msra.mxu0 %v638
    %734 = vmatprep.subr.mxu0 %v636
    %735 = vmatpush1.msra.mxu0 %v635
    %736 = vmatprep.subr.mxu0 %v633
    %737 = vmatpush1.msra.mxu0 %v632
    %738 = vmatprep.subr.mxu0 %v630
    %739 = vmatpush1.msra.mxu0 %v629
    %740 = vmatprep.subr.mxu0 %v627
    %741 = vmatpush1.msra.mxu0 %v626
    %742 = vmatprep.subr.mxu0 %v624
    %743 = vmatpush1.msra.mxu0 %v623
    %744 = vmatprep.subr.mxu0 %v621
    %745 = vmatpush1.msra.mxu0 %v620
    %746 = vmatprep.subr.mxu0 %v618
    %747 = vmatpush1.msra.mxu0 %v617
    %748 = vmatprep.subr.mxu0 %v615
    %749 = vmatpush1.msra.mxu0 %v614
    %750 = vmatprep.subr.mxu0 %v612
    %751 = vmatpush1.msra.mxu0 %v611
    %752 = vmatprep.subr.mxu0 %v609
    %753 = vmatpush1.msra.mxu0 %v608
    %754 = vmatprep.subr.mxu0 %v606
    %755 = vmatpush1.msra.mxu0 %v605
    %756 = vmatprep.subr.mxu0 0.0
    %757 = vmatpush2.msra.mxu0 0.0
    %758 = vmatprep.subr.mxu0 0.0
    %759 = vmatpush2.msra.mxu0 0.0
    %760 = vmatprep.subr.mxu0 0.0
    %761 = vmatpush2.msra.mxu0 0.0
    %762 = vmatprep.subr.mxu0 0.0
    %763 = vmatpush2.msra.mxu0 0.0
    %764 = vmatprep.subr.mxu0 0.0
    %765 = vmatpush2.msra.mxu0 0.0
    %766 = vmatprep.subr.mxu0 0.0
    %767 = vmatpush2.msra.mxu0 0.0
    %768 = vmatprep.subr.mxu0 0.0
    %769 = vmatpush2.msra.mxu0 0.0
    %770 = vmatprep.subr.mxu0 0.0
    %771 = vmatpush2.msra.mxu0 0.0
    %772 = vmatprep.subr.mxu0 0.0
    %773 = vmatpush2.msra.mxu0 0.0
    %774 = vmatprep.subr.mxu0 0.0
    %775 = vmatpush2.msra.mxu0 0.0
    %776 = vmatprep.subr.mxu0 0.0
    %777 = vmatpush2.msra.mxu0 0.0
    %778 = vmatprep.subr.mxu0 0.0
    %779 = vmatpush2.msra.mxu0 0.0
    %780 = vmatprep.subr.mxu0 0.0
    %781 = vmatpush2.msra.mxu0 0.0
    %782 = vmatprep.subr.mxu0 0.0
    %783 = vmatpush2.msra.mxu0 0.0
    %784 = vmatprep.subr.mxu0 0.0
    %785 = vmatpush2.msra.mxu0 0.0
    %786 = vmatprep.subr.mxu0 0.0
    %787 = vmatpush2.msra.mxu0 0.0
    %788 = vmatprep.mubr.f32.mxu0 0.0
    %789 = vmatmul.mubr.f32.gmra.mxu0 %v508
    %v790 = vpop.f32.mrf.mxu0
    %v791 = vadd.f32 %v720, %v790
    %v792 = vpop.f32.mrf.mxu0
    %v793 = vadd.f32 %v722, %v792
    %794 = vdwg.mxu0
    %795 = vmatprep.subr.mxu0 0.0
    %796 = vmatpush1.msra.mxu0 %v556
    %797 = vmatprep.subr.mxu0 0.0
    %798 = vmatpush1.msra.mxu0 %v553
    %799 = vmatprep.subr.mxu0 0.0
    %800 = vmatpush1.msra.mxu0 %v550
    %801 = vmatprep.subr.mxu0 0.0
    %802 = vmatpush1.msra.mxu0 %v547
    %803 = vmatprep.subr.mxu0 0.0
    %804 = vmatpush1.msra.mxu0 %v544
    %805 = vmatprep.subr.mxu0 0.0
    %806 = vmatpush1.msra.mxu0 %v541
    %807 = vmatprep.subr.mxu0 0.0
    %808 = vmatpush1.msra.mxu0 %v538
    %809 = vmatprep.subr.mxu0 0.0
    %810 = vmatpush1.msra.mxu0 %v535
    %811 = vmatprep.subr.mxu0 0.0
    %812 = vmatpush1.msra.mxu0 %v532
    %813 = vmatprep.subr.mxu0 0.0
    %814 = vmatpush1.msra.mxu0 %v529
    %815 = vmatprep.subr.mxu0 0.0
    %816 = vmatpush1.msra.mxu0 %v526
    %817 = vmatprep.subr.mxu0 0.0
    %818 = vmatpush1.msra.mxu0 %v523
    %819 = vmatprep.subr.mxu0 0.0
    %820 = vmatpush1.msra.mxu0 %v520
    %821 = vmatprep.subr.mxu0 0.0
    %822 = vmatpush1.msra.mxu0 %v517
    %823 = vmatprep.subr.mxu0 0.0
    %824 = vmatpush1.msra.mxu0 %v514
    %825 = vmatprep.subr.mxu0 0.0
    %826 = vmatpush1.msra.mxu0 %v511
    %827 = vmatprep.subr.mxu0 0.0
    %828 = vmatpush2.msra.mxu0 %v604
    %829 = vmatprep.subr.mxu0 0.0
    %830 = vmatpush2.msra.mxu0 %v601
    %831 = vmatprep.subr.mxu0 0.0
    %832 = vmatpush2.msra.mxu0 %v598
    %833 = vmatprep.subr.mxu0 0.0
    %834 = vmatpush2.msra.mxu0 %v595
    %835 = vmatprep.subr.mxu0 0.0
    %836 = vmatpush2.msra.mxu0 %v592
    %837 = vmatprep.subr.mxu0 0.0
    %838 = vmatpush2.msra.mxu0 %v589
    %839 = vmatprep.subr.mxu0 0.0
    %840 = vmatpush2.msra.mxu0 %v586
    %841 = vmatprep.subr.mxu0 0.0
    %842 = vmatpush2.msra.mxu0 %v583
    %843 = vmatprep.subr.mxu0 0.0
    %844 = vmatpush2.msra.mxu0 %v580
    %845 = vmatprep.subr.mxu0 0.0
    %846 = vmatpush2.msra.mxu0 %v577
    %847 = vmatprep.subr.mxu0 0.0
    %848 = vmatpush2.msra.mxu0 %v574
    %849 = vmatprep.subr.mxu0 0.0
    %850 = vmatpush2.msra.mxu0 %v571
    %851 = vmatprep.subr.mxu0 0.0
    %852 = vmatpush2.msra.mxu0 %v568
    %853 = vmatprep.subr.mxu0 0.0
    %854 = vmatpush2.msra.mxu0 %v565
    %855 = vmatprep.subr.mxu0 0.0
    %856 = vmatpush2.msra.mxu0 %v562
    %857 = vmatprep.subr.mxu0 0.0
    %858 = vmatpush2.msra.mxu0 %v559
    %859 = vmatprep.mubr.f32.mxu0 %v506
    %860 = vmatmul.mubr.f32.gmra.mxu0 %v504
    %v861 = vpop.f32.mrf.mxu0
    %v862 = vadd.f32 0.0, %v861
    %v863 = vpop.f32.mrf.mxu0
    %864 = vdwg.mxu0
    %865 = vmatprep.subr.mxu0 0.0
    %866 = vmatpush1.msra.mxu0 %v652
    %867 = vmatprep.subr.mxu0 0.0
    %868 = vmatpush1.msra.mxu0 %v649
    %869 = vmatprep.subr.mxu0 0.0
    %870 = vmatpush1.msra.mxu0 %v646
    %871 = vmatprep.subr.mxu0 0.0
    %872 = vmatpush1.msra.mxu0 %v643
    %873 = vmatprep.subr.mxu0 0.0
    %874 = vmatpush1.msra.mxu0 %v640
    %875 = vmatprep.subr.mxu0 0.0
    %876 = vmatpush1.msra.mxu0 %v637
    %877 = vmatprep.subr.mxu0 0.0
    %878 = vmatpush1.msra.mxu0 %v634
    %879 = vmatprep.subr.mxu0 0.0
    %880 = vmatpush1.msra.mxu0 %v631
    %881 = vmatprep.subr.mxu0 0.0
    %882 = vmatpush1.msra.mxu0 %v628
    %883 = vmatprep.subr.mxu0 0.0
    %884 = vmatpush1.msra.mxu0 %v625
    %885 = vmatprep.subr.mxu0 0.0
    %886 = vmatpush1.msra.mxu0 %v622
    %887 = vmatprep.subr.mxu0 0.0
    %888 = vmatpush1.msra.mxu0 %v619
    %889 = vmatprep.subr.mxu0 0.0
    %890 = vmatpush1.msra.mxu0 %v616
    %891 = vmatprep.subr.mxu0 0.0
    %892 = vmatpush1.msra.mxu0 %v613
    %893 = vmatprep.subr.mxu0 0.0
    %894 = vmatpush1.msra.mxu0 %v610
    %895 = vmatprep.subr.mxu0 0.0
    %896 = vmatpush1.msra.mxu0 %v607
    %897 = vmatprep.subr.mxu0 0.0
    %898 = vmatpush2.msra.mxu0 0.0
    %899 = vmatprep.subr.mxu0 0.0
    %900 = vmatpush2.msra.mxu0 0.0
    %901 = vmatprep.subr.mxu0 0.0
    %902 = vmatpush2.msra.mxu0 0.0
    %903 = vmatprep.subr.mxu0 0.0
    %904 = vmatpush2.msra.mxu0 0.0
    %905 = vmatprep.subr.mxu0 0.0
    %906 = vmatpush2.msra.mxu0 0.0
    %907 = vmatprep.subr.mxu0 0.0
    %908 = vmatpush2.msra.mxu0 0.0
    %909 = vmatprep.subr.mxu0 0.0
    %910 = vmatpush2.msra.mxu0 0.0
    %911 = vmatprep.subr.mxu0 0.0
    %912 = vmatpush2.msra.mxu0 0.0
    %913 = vmatprep.subr.mxu0 0.0
    %914 = vmatpush2.msra.mxu0 0.0
    %915 = vmatprep.subr.mxu0 0.0
    %916 = vmatpush2.msra.mxu0 0.0
    %917 = vmatprep.subr.mxu0 0.0
    %918 = vmatpush2.msra.mxu0 0.0
    %919 = vmatprep.subr.mxu0 0.0
    %920 = vmatpush2.msra.mxu0 0.0
    %921 = vmatprep.subr.mxu0 0.0
    %922 = vmatpush2.msra.mxu0 0.0
    %923 = vmatprep.subr.mxu0 0.0
    %924 = vmatpush2.msra.mxu0 0.0
    %925 = vmatprep.subr.mxu0 0.0
    %926 = vmatpush2.msra.mxu0 0.0
    %927 = vmatprep.subr.mxu0 0.0
    %928 = vmatpush2.msra.mxu0 0.0
    %929 = vmatprep.mubr.f32.mxu0 0.0
    %930 = vmatmul.mubr.f32.gmra.mxu0 %v508
    %v931 = vpop.f32.mrf.mxu0
    %v932 = vadd.f32 %v862, %v931
    %v933 = vpop.f32.mrf.mxu0
    %934 = vdwg.mxu0
    %935 = vst [vmem:[#allocation11] sm:$0xff] %v791
    %936 = vst [vmem:[#allocation11 + $0x8] sm:$0xff] %v793
    %937 = vst [vmem:[#allocation11 + $0x10] sm:$0xff] %v932
    // Predicated region
    $region54: #{tpu_custom_call.1} parent=1 // pred_check
      _
    $region55: #{tpu_custom_call.1} parent=1 // pred_check_branch
      %939 = sbr.rel (0) target = $region57
    $region56: #{tpu_custom_call.1} parent=1 // pred_region
      %s941 = ssub.s32 384, 384
      %942 = vsyncadd [#allocation4], %s941
      %s944 = sshll.u32 [#allocation11], 4
      %s945 = int_to_ptr.vmem [resolvable:$true] %s944
      %947 = dma.vmem_to_hbm [thread:$0]  %s945, 384, %s8, [#allocation4]
    $region57: #{tpu_custom_call.1} parent=1 // pred_fallthru
      _
    // Predicated region
    $region58: #{tpu_custom_call.1} parent=1 // pred_check
      _
    $region59: #{tpu_custom_call.1} parent=1 // pred_check_branch
      %949 = sbr.rel (0) target = $region61
    $region60: #{tpu_custom_call.1} parent=1 // pred_region
      %950 = dma.done [#allocation4], 384
    $region61: #{tpu_custom_call.1} parent=1 // pred_fallthru
      _
    %951 = vsyncpa [#allocation3], 1
    %952 = vsyncpa [#allocation6], 1
    %953 = vsyncpa [#allocation9], 1
    %954 = vsyncpa [#allocation4], 1

</llo_original>
